<compile_context>
chip_gen: v7x
topology: tpu7x:2x2x1
jax: 0.10.0
libtpu: 0.0.40
codegen_flags: <defaults>
</compile_context>

<pallas_src>
import jax
import jax.numpy as jnp
import numpy as np
from jax.experimental import pallas as pl
from jax.experimental.pallas import tpu as pltpu

# ---------------- model config (small, consistent with the module) ----------
VOCAB = 32          # vocab_size
EMB = 32            # embedding_dim
HID = 32            # hidden_dim (== EMB so per-layer weights stack)
LAYERS = 2          # num_layers
BATCH = 2
SEQ = 8
DROPOUT_P = 0.1     # eval mode -> identity

# Padded working layout inside the kernel (lane/sublane dense).
HP = 128            # lane-padded embedding/hidden width
BP = 8              # sublane-padded batch


def encoder_kernel(x_ref, w0in_ref, b0_ref, w_ref, b_ref, out_ref, hN_ref):
    """Single-invocation fused encoder (everything resident in VMEM).

    x_ref    : (T*BP, HP)  f32  padded embeddings, time-major rows (eval dropout = id)
    w0in_ref : (HP, HP)    f32  W_ih_0^T in [0:EMB, 0:HID], zeros elsewhere
    b0_ref   : (1, HP)     f32  b_ih_0 + b_hh_0 (padded)
    w_ref    : (L, HP, HP) f32  layer 0  : W_hh_0^T in rows 0:HID
                                layer l>0: W_ih_l^T rows 0:HID, W_hh_l^T rows HID:2*HID
    b_ref    : (L, 1, HP)  f32  b_ih_l + b_hh_l for l>0 (layer-0 slot zero, folded in b0)
    out_ref  : (T, BP, HP) f32  per-step top-layer hidden
    hN_ref   : (L, BP, HP) f32  final hidden state
    """
    T = out_ref.shape[0]
    L = w_ref.shape[0]

    # Prologue: layer-0 input projection for the whole sequence, one MXU matmul.
    pre0 = jnp.dot(x_ref[...], w0in_ref[...],
                   preferred_element_type=jnp.float32) + b0_ref[...]   # (T*BP, HP)

    # nn.RNN default h0 = 0; padding lanes provably stay zero through tanh.
    h = [jnp.zeros((BP, HP), jnp.float32) for _ in range(L)]

    for t in range(T):                                    # static unroll (T is small)
        # layer 0: recurrent term only (input term precomputed above).
        pre_t = pre0[t * BP:(t + 1) * BP, :]              # aligned (8,128) tile slice
        h[0] = jnp.tanh(pre_t + jnp.dot(h[0], w_ref[0],
                                        preferred_element_type=jnp.float32))
        x = h[0]
        # layers 1..L-1: pack [x | h] into one 128-lane operand -> single K=128 dot.
        for l in range(1, L):
            xh = x + pltpu.roll(h[l], shift=HID, axis=1)  # h values -> lanes HID:2*HID
            h[l] = jnp.tanh(jnp.dot(xh, w_ref[l],
                                    preferred_element_type=jnp.float32) + b_ref[l])
            x = h[l]                                      # inter-layer dropout = id (eval)
        out_ref[t] = x                                    # VMEM store; HBM writeback once

    for l in range(L):
        hN_ref[l] = h[l]


def encoder_forward(x_ids, params):
    """x_ids: (B, T) int32 token ids.

    Returns (outputs (B, T, H), hidden (L, B, H)) like nn.RNN(batch_first=True).
    """
    B, T = x_ids.shape
    assert B <= BP, f"batch {B} exceeds padded batch {BP}"

    # Embedding gather hoisted out of the kernel (eval dropout = identity),
    # padded once to the lane/sublane-dense kernel layout, time-major.
    emb = params["embedding"][x_ids.astype(jnp.int32)]      # (B, T, E)
    emb_tm = jnp.transpose(emb, (1, 0, 2))                  # (T, B, E)
    x_p = jnp.zeros((T, BP, HP), jnp.float32).at[:, :B, :EMB].set(emb_tm)
    x_p = x_p.reshape(T * BP, HP)

    vmem = pl.BlockSpec(memory_space=pltpu.MemorySpace.VMEM)
    out_p, h_p = pl.pallas_call(
        encoder_kernel,
        out_shape=(
            jax.ShapeDtypeStruct((T, BP, HP), jnp.float32),
            jax.ShapeDtypeStruct((LAYERS, BP, HP), jnp.float32),
        ),
        in_specs=[vmem] * 5,
        out_specs=(vmem, vmem),
    )(x_p, params["w0in_p"], params["b0_p"], params["w_p"], params["b_p"])

    outputs = jnp.transpose(out_p[:, :B, :HID], (1, 0, 2))   # (B, T, H) batch_first
    hidden = h_p[:, :B, :HID]                                # (L, B, H)
    return outputs, hidden


def init_params(key):
    """PyTorch-style init (U(-1/sqrt(H),1/sqrt(H)) for RNN, N(0,1) embedding),
    plus one-time packing/padding of the kernel operands (hoisted out of the
    per-call forward path)."""
    assert EMB == HID, "stacked per-layer weights assume embedding_dim == hidden_dim"
    ks = jax.random.split(key, 5)
    bound = 1.0 / np.sqrt(HID)
    u = lambda k, shape: jax.random.uniform(k, shape, jnp.float32, -bound, bound)

    embedding = jax.random.normal(ks[0], (VOCAB, EMB), jnp.float32)
    w_ih = u(ks[1], (LAYERS, HID, EMB))      # layer 0 input dim == EMB == HID
    w_hh = u(ks[2], (LAYERS, HID, HID))
    b_ih = u(ks[3], (LAYERS, HID))
    b_hh = u(ks[4], (LAYERS, HID))

    # Packed / padded kernel operands (built once here).
    # Layer-0 input projection (used in the in-kernel prologue).
    w0in_p = jnp.zeros((HP, HP), jnp.float32).at[:EMB, :HID].set(w_ih[0].T)
    b0_p = jnp.zeros((1, HP), jnp.float32).at[0, :HID].set(b_ih[0] + b_hh[0])

    # Per-layer recurrent weights, K=128 packing:
    #   layer 0  : W_hh_0^T in rows 0:HID (h0 lives in lanes 0:HID)
    #   layer l>0: W_ih_l^T rows 0:HID, W_hh_l^T rows HID:2*HID ([x | roll(h)] operand)
    w_p = jnp.zeros((LAYERS, HP, HP), jnp.float32)
    w_p = w_p.at[0, :HID, :HID].set(w_hh[0].T)
    b_p = jnp.zeros((LAYERS, 1, HP), jnp.float32)
    for l in range(1, LAYERS):
        w_p = w_p.at[l, :HID, :HID].set(w_ih[l].T)
        w_p = w_p.at[l, HID:2 * HID, :HID].set(w_hh[l].T)
        b_p = b_p.at[l, 0, :HID].set(b_ih[l] + b_hh[l])

    return {
        "embedding": embedding, "w_ih": w_ih, "w_hh": w_hh,
        "b_ih": b_ih, "b_hh": b_hh,
        "w0in_p": w0in_p, "b0_p": b0_p, "w_p": w_p, "b_p": b_p,
    }


def encoder_forward_ref(x_ids, params):
    """Pure-JAX reference matching nn.Embedding + nn.RNN(batch_first=True), eval."""
    B, T = x_ids.shape
    emb = params["embedding"][x_ids]                     # (B, T, E)
    h = jnp.zeros((LAYERS, B, HID), jnp.float32)
    outs = []
    for t in range(T):
        x = emb[:, t, :]
        hs = []
        for l in range(LAYERS):
            pre = (x @ params["w_ih"][l].T + params["b_ih"][l]
                   + h[l] @ params["w_hh"][l].T + params["b_hh"][l])
            x = jnp.tanh(pre)
            hs.append(x)
        h = jnp.stack(hs, axis=0)
        outs.append(x)
    outputs = jnp.stack(outs, axis=1)                    # (B, T, H)
    return outputs, h


if __name__ == "__main__":
    key = jax.random.PRNGKey(0)
    kp, kx = jax.random.split(key)
    params = init_params(kp)
    x_ids = jax.random.randint(kx, (BATCH, SEQ), 0, VOCAB, dtype=jnp.int32)

    fwd = jax.jit(encoder_forward)
    outputs, hidden = fwd(x_ids, params)
    outputs = jax.block_until_ready(outputs)
    hidden = jax.block_until_ready(hidden)

    out_ref, h_ref = encoder_forward_ref(x_ids, params)
    np.testing.assert_allclose(np.asarray(outputs), np.asarray(out_ref),
                               rtol=1e-5, atol=1e-5)
    np.testing.assert_allclose(np.asarray(hidden), np.asarray(h_ref),
                               rtol=1e-5, atol=1e-5)
    print("KERNEL_OK")
</pallas_src>

<mosaic_0001>
module attributes {stable_mosaic.version = 11 : i64} {
  func.func @encoder_kernel(%arg0: memref<64x128xf32, #tpu.memory_space<vmem>>, %arg1: memref<128x128xf32, #tpu.memory_space<vmem>>, %arg2: memref<1x128xf32, #tpu.memory_space<vmem>>, %arg3: memref<2x128x128xf32, #tpu.memory_space<vmem>>, %arg4: memref<2x1x128xf32, #tpu.memory_space<vmem>>, %arg5: memref<8x8x128xf32, #tpu.memory_space<vmem>>, %arg6: memref<2x8x128xf32, #tpu.memory_space<vmem>>) attributes {dimension_semantics = [], scalar_prefetch = 0 : i64, scratch_operands = 0 : i64, tpu.core_type = #tpu.core_type<tc>} {
    %c0 = arith.constant 0 : index
    %c0_0 = arith.constant 0 : index
    %0 = vector.load %arg0[%c0, %c0_0] : memref<64x128xf32, #tpu.memory_space<vmem>>, vector<64x128xf32>
    %c0_1 = arith.constant 0 : index
    %c0_2 = arith.constant 0 : index
    %1 = vector.load %arg1[%c0_1, %c0_2] : memref<128x128xf32, #tpu.memory_space<vmem>>, vector<128x128xf32>
    %cst = arith.constant dense<0.000000e+00> : vector<64x128xf32>
    %2 = tpu.matmul %0, %1, %cst {dimension_numbers = #tpu.dot_dimension_numbers<[1], [0], [0], [1], [0, 0, 1, 1], [], []>} : vector<64x128xf32>, vector<128x128xf32>, vector<64x128xf32> -> vector<64x128xf32>
    %c0_3 = arith.constant 0 : index
    %c0_4 = arith.constant 0 : index
    %3 = vector.load %arg2[%c0_3, %c0_4] : memref<1x128xf32, #tpu.memory_space<vmem>>, vector<1x128xf32>
    %4 = vector.broadcast %3 : vector<1x128xf32> to vector<64x128xf32>
    %5 = arith.addf %2, %4 : vector<64x128xf32>
    %cst_5 = arith.constant 0.000000e+00 : f32
    %6 = vector.broadcast %cst_5 : f32 to vector<8x128xf32>
    %cst_6 = arith.constant 0.000000e+00 : f32
    %7 = vector.broadcast %cst_6 : f32 to vector<8x128xf32>
    %8 = vector.extract_strided_slice %5 {offsets = [0, 0], sizes = [8, 128], strides = [1, 1]} : vector<64x128xf32> to vector<8x128xf32>
    %c0_7 = arith.constant 0 : index
    %c0_8 = arith.constant 0 : index
    %c0_9 = arith.constant 0 : index
    %9 = vector.load %arg3[%c0_7, %c0_8, %c0_9] : memref<2x128x128xf32, #tpu.memory_space<vmem>>, vector<1x128x128xf32>
    %10 = vector.shape_cast %9 : vector<1x128x128xf32> to vector<128x128xf32>
    %cst_10 = arith.constant dense<0.000000e+00> : vector<8x128xf32>
    %11 = tpu.matmul %6, %10, %cst_10 {dimension_numbers = #tpu.dot_dimension_numbers<[1], [0], [0], [1], [0, 0, 1, 1], [], []>} : vector<8x128xf32>, vector<128x128xf32>, vector<8x128xf32> -> vector<8x128xf32>
    %12 = arith.addf %8, %11 : vector<8x128xf32>
    %13 = math.tanh %12 : vector<8x128xf32>
    %c32_i32 = arith.constant 32 : i32
    %14 = tpu.dynamic_rotate %7 by %c32_i32 dim 1 : vector<8x128xf32>, i32 -> vector<8x128xf32>
    %15 = arith.addf %13, %14 : vector<8x128xf32>
    %c1 = arith.constant 1 : index
    %c0_11 = arith.constant 0 : index
    %c0_12 = arith.constant 0 : index
    %16 = vector.load %arg3[%c1, %c0_11, %c0_12] : memref<2x128x128xf32, #tpu.memory_space<vmem>>, vector<1x128x128xf32>
    %17 = vector.shape_cast %16 : vector<1x128x128xf32> to vector<128x128xf32>
    %cst_13 = arith.constant dense<0.000000e+00> : vector<8x128xf32>
    %18 = tpu.matmul %15, %17, %cst_13 {dimension_numbers = #tpu.dot_dimension_numbers<[1], [0], [0], [1], [0, 0, 1, 1], [], []>} : vector<8x128xf32>, vector<128x128xf32>, vector<8x128xf32> -> vector<8x128xf32>
    %c1_14 = arith.constant 1 : index
    %c0_15 = arith.constant 0 : index
    %c0_16 = arith.constant 0 : index
    %19 = vector.load %arg4[%c1_14, %c0_15, %c0_16] : memref<2x1x128xf32, #tpu.memory_space<vmem>>, vector<1x1x128xf32>
    %20 = vector.shape_cast %19 : vector<1x1x128xf32> to vector<1x128xf32>
    %21 = vector.broadcast %20 : vector<1x128xf32> to vector<8x128xf32>
    %22 = arith.addf %18, %21 : vector<8x128xf32>
    %23 = math.tanh %22 : vector<8x128xf32>
    %c0_17 = arith.constant 0 : index
    %c0_18 = arith.constant 0 : index
    %c0_19 = arith.constant 0 : index
    %24 = vector.load %arg5[%c0_17, %c0_18, %c0_19] : memref<8x8x128xf32, #tpu.memory_space<vmem>>, vector<1x8x128xf32>
    %25 = vector.shape_cast %24 : vector<1x8x128xf32> to vector<8x128xf32>
    %26 = vector.shape_cast %23 : vector<8x128xf32> to vector<1x8x128xf32>
    tpu.vector_store %arg5[%c0_17, %c0_18, %c0_19], %26 {strides = array<i32>} : memref<8x8x128xf32, #tpu.memory_space<vmem>>, vector<1x8x128xf32>,
    %27 = vector.extract_strided_slice %5 {offsets = [8, 0], sizes = [8, 128], strides = [1, 1]} : vector<64x128xf32> to vector<8x128xf32>
    %c0_20 = arith.constant 0 : index
    %c0_21 = arith.constant 0 : index
    %c0_22 = arith.constant 0 : index
    %28 = vector.load %arg3[%c0_20, %c0_21, %c0_22] : memref<2x128x128xf32, #tpu.memory_space<vmem>>, vector<1x128x128xf32>
    %29 = vector.shape_cast %28 : vector<1x128x128xf32> to vector<128x128xf32>
    %cst_23 = arith.constant dense<0.000000e+00> : vector<8x128xf32>
    %30 = tpu.matmul %13, %29, %cst_23 {dimension_numbers = #tpu.dot_dimension_numbers<[1], [0], [0], [1], [0, 0, 1, 1], [], []>} : vector<8x128xf32>, vector<128x128xf32>, vector<8x128xf32> -> vector<8x128xf32>
    %31 = arith.addf %27, %30 : vector<8x128xf32>
    %32 = math.tanh %31 : vector<8x128xf32>
    %c32_i32_24 = arith.constant 32 : i32
    %33 = tpu.dynamic_rotate %23 by %c32_i32_24 dim 1 : vector<8x128xf32>, i32 -> vector<8x128xf32>
    %34 = arith.addf %32, %33 : vector<8x128xf32>
    %c1_25 = arith.constant 1 : index
    %c0_26 = arith.constant 0 : index
    %c0_27 = arith.constant 0 : index
    %35 = vector.load %arg3[%c1_25, %c0_26, %c0_27] : memref<2x128x128xf32, #tpu.memory_space<vmem>>, vector<1x128x128xf32>
    %36 = vector.shape_cast %35 : vector<1x128x128xf32> to vector<128x128xf32>
    %cst_28 = arith.constant dense<0.000000e+00> : vector<8x128xf32>
    %37 = tpu.matmul %34, %36, %cst_28 {dimension_numbers = #tpu.dot_dimension_numbers<[1], [0], [0], [1], [0, 0, 1, 1], [], []>} : vector<8x128xf32>, vector<128x128xf32>, vector<8x128xf32> -> vector<8x128xf32>
    %c1_29 = arith.constant 1 : index
    %c0_30 = arith.constant 0 : index
    %c0_31 = arith.constant 0 : index
    %38 = vector.load %arg4[%c1_29, %c0_30, %c0_31] : memref<2x1x128xf32, #tpu.memory_space<vmem>>, vector<1x1x128xf32>
    %39 = vector.shape_cast %38 : vector<1x1x128xf32> to vector<1x128xf32>
    %40 = vector.broadcast %39 : vector<1x128xf32> to vector<8x128xf32>
    %41 = arith.addf %37, %40 : vector<8x128xf32>
    %42 = math.tanh %41 : vector<8x128xf32>
    %c1_32 = arith.constant 1 : index
    %c0_33 = arith.constant 0 : index
    %c0_34 = arith.constant 0 : index
    %43 = vector.load %arg5[%c1_32, %c0_33, %c0_34] : memref<8x8x128xf32, #tpu.memory_space<vmem>>, vector<1x8x128xf32>
    %44 = vector.shape_cast %43 : vector<1x8x128xf32> to vector<8x128xf32>
    %45 = vector.shape_cast %42 : vector<8x128xf32> to vector<1x8x128xf32>
    tpu.vector_store %arg5[%c1_32, %c0_33, %c0_34], %45 {strides = array<i32>} : memref<8x8x128xf32, #tpu.memory_space<vmem>>, vector<1x8x128xf32>,
    %46 = vector.extract_strided_slice %5 {offsets = [16, 0], sizes = [8, 128], strides = [1, 1]} : vector<64x128xf32> to vector<8x128xf32>
    %c0_35 = arith.constant 0 : index
    %c0_36 = arith.constant 0 : index
    %c0_37 = arith.constant 0 : index
    %47 = vector.load %arg3[%c0_35, %c0_36, %c0_37] : memref<2x128x128xf32, #tpu.memory_space<vmem>>, vector<1x128x128xf32>
    %48 = vector.shape_cast %47 : vector<1x128x128xf32> to vector<128x128xf32>
    %cst_38 = arith.constant dense<0.000000e+00> : vector<8x128xf32>
    %49 = tpu.matmul %32, %48, %cst_38 {dimension_numbers = #tpu.dot_dimension_numbers<[1], [0], [0], [1], [0, 0, 1, 1], [], []>} : vector<8x128xf32>, vector<128x128xf32>, vector<8x128xf32> -> vector<8x128xf32>
    %50 = arith.addf %46, %49 : vector<8x128xf32>
    %51 = math.tanh %50 : vector<8x128xf32>
    %c32_i32_39 = arith.constant 32 : i32
    %52 = tpu.dynamic_rotate %42 by %c32_i32_39 dim 1 : vector<8x128xf32>, i32 -> vector<8x128xf32>
    %53 = arith.addf %51, %52 : vector<8x128xf32>
    %c1_40 = arith.constant 1 : index
    %c0_41 = arith.constant 0 : index
    %c0_42 = arith.constant 0 : index
    %54 = vector.load %arg3[%c1_40, %c0_41, %c0_42] : memref<2x128x128xf32, #tpu.memory_space<vmem>>, vector<1x128x128xf32>
    %55 = vector.shape_cast %54 : vector<1x128x128xf32> to vector<128x128xf32>
    %cst_43 = arith.constant dense<0.000000e+00> : vector<8x128xf32>
    %56 = tpu.matmul %53, %55, %cst_43 {dimension_numbers = #tpu.dot_dimension_numbers<[1], [0], [0], [1], [0, 0, 1, 1], [], []>} : vector<8x128xf32>, vector<128x128xf32>, vector<8x128xf32> -> vector<8x128xf32>
    %c1_44 = arith.constant 1 : index
    %c0_45 = arith.constant 0 : index
    %c0_46 = arith.constant 0 : index
    %57 = vector.load %arg4[%c1_44, %c0_45, %c0_46] : memref<2x1x128xf32, #tpu.memory_space<vmem>>, vector<1x1x128xf32>
    %58 = vector.shape_cast %57 : vector<1x1x128xf32> to vector<1x128xf32>
    %59 = vector.broadcast %58 : vector<1x128xf32> to vector<8x128xf32>
    %60 = arith.addf %56, %59 : vector<8x128xf32>
    %61 = math.tanh %60 : vector<8x128xf32>
    %c2 = arith.constant 2 : index
    %c0_47 = arith.constant 0 : index
    %c0_48 = arith.constant 0 : index
    %62 = vector.load %arg5[%c2, %c0_47, %c0_48] : memref<8x8x128xf32, #tpu.memory_space<vmem>>, vector<1x8x128xf32>
    %63 = vector.shape_cast %62 : vector<1x8x128xf32> to vector<8x128xf32>
    %64 = vector.shape_cast %61 : vector<8x128xf32> to vector<1x8x128xf32>
    tpu.vector_store %arg5[%c2, %c0_47, %c0_48], %64 {strides = array<i32>} : memref<8x8x128xf32, #tpu.memory_space<vmem>>, vector<1x8x128xf32>,
    %65 = vector.extract_strided_slice %5 {offsets = [24, 0], sizes = [8, 128], strides = [1, 1]} : vector<64x128xf32> to vector<8x128xf32>
    %c0_49 = arith.constant 0 : index
    %c0_50 = arith.constant 0 : index
    %c0_51 = arith.constant 0 : index
    %66 = vector.load %arg3[%c0_49, %c0_50, %c0_51] : memref<2x128x128xf32, #tpu.memory_space<vmem>>, vector<1x128x128xf32>
    %67 = vector.shape_cast %66 : vector<1x128x128xf32> to vector<128x128xf32>
    %cst_52 = arith.constant dense<0.000000e+00> : vector<8x128xf32>
    %68 = tpu.matmul %51, %67, %cst_52 {dimension_numbers = #tpu.dot_dimension_numbers<[1], [0], [0], [1], [0, 0, 1, 1], [], []>} : vector<8x128xf32>, vector<128x128xf32>, vector<8x128xf32> -> vector<8x128xf32>
    %69 = arith.addf %65, %68 : vector<8x128xf32>
    %70 = math.tanh %69 : vector<8x128xf32>
    %c32_i32_53 = arith.constant 32 : i32
    %71 = tpu.dynamic_rotate %61 by %c32_i32_53 dim 1 : vector<8x128xf32>, i32 -> vector<8x128xf32>
    %72 = arith.addf %70, %71 : vector<8x128xf32>
    %c1_54 = arith.constant 1 : index
    %c0_55 = arith.constant 0 : index
    %c0_56 = arith.constant 0 : index
    %73 = vector.load %arg3[%c1_54, %c0_55, %c0_56] : memref<2x128x128xf32, #tpu.memory_space<vmem>>, vector<1x128x128xf32>
    %74 = vector.shape_cast %73 : vector<1x128x128xf32> to vector<128x128xf32>
    %cst_57 = arith.constant dense<0.000000e+00> : vector<8x128xf32>
    %75 = tpu.matmul %72, %74, %cst_57 {dimension_numbers = #tpu.dot_dimension_numbers<[1], [0], [0], [1], [0, 0, 1, 1], [], []>} : vector<8x128xf32>, vector<128x128xf32>, vector<8x128xf32> -> vector<8x128xf32>
    %c1_58 = arith.constant 1 : index
    %c0_59 = arith.constant 0 : index
    %c0_60 = arith.constant 0 : index
    %76 = vector.load %arg4[%c1_58, %c0_59, %c0_60] : memref<2x1x128xf32, #tpu.memory_space<vmem>>, vector<1x1x128xf32>
    %77 = vector.shape_cast %76 : vector<1x1x128xf32> to vector<1x128xf32>
    %78 = vector.broadcast %77 : vector<1x128xf32> to vector<8x128xf32>
    %79 = arith.addf %75, %78 : vector<8x128xf32>
    %80 = math.tanh %79 : vector<8x128xf32>
    %c3 = arith.constant 3 : index
    %c0_61 = arith.constant 0 : index
    %c0_62 = arith.constant 0 : index
    %81 = vector.load %arg5[%c3, %c0_61, %c0_62] : memref<8x8x128xf32, #tpu.memory_space<vmem>>, vector<1x8x128xf32>
    %82 = vector.shape_cast %81 : vector<1x8x128xf32> to vector<8x128xf32>
    %83 = vector.shape_cast %80 : vector<8x128xf32> to vector<1x8x128xf32>
    tpu.vector_store %arg5[%c3, %c0_61, %c0_62], %83 {strides = array<i32>} : memref<8x8x128xf32, #tpu.memory_space<vmem>>, vector<1x8x128xf32>,
    %84 = vector.extract_strided_slice %5 {offsets = [32, 0], sizes = [8, 128], strides = [1, 1]} : vector<64x128xf32> to vector<8x128xf32>
    %c0_63 = arith.constant 0 : index
    %c0_64 = arith.constant 0 : index
    %c0_65 = arith.constant 0 : index
    %85 = vector.load %arg3[%c0_63, %c0_64, %c0_65] : memref<2x128x128xf32, #tpu.memory_space<vmem>>, vector<1x128x128xf32>
    %86 = vector.shape_cast %85 : vector<1x128x128xf32> to vector<128x128xf32>
    %cst_66 = arith.constant dense<0.000000e+00> : vector<8x128xf32>
    %87 = tpu.matmul %70, %86, %cst_66 {dimension_numbers = #tpu.dot_dimension_numbers<[1], [0], [0], [1], [0, 0, 1, 1], [], []>} : vector<8x128xf32>, vector<128x128xf32>, vector<8x128xf32> -> vector<8x128xf32>
    %88 = arith.addf %84, %87 : vector<8x128xf32>
    %89 = math.tanh %88 : vector<8x128xf32>
    %c32_i32_67 = arith.constant 32 : i32
    %90 = tpu.dynamic_rotate %80 by %c32_i32_67 dim 1 : vector<8x128xf32>, i32 -> vector<8x128xf32>
    %91 = arith.addf %89, %90 : vector<8x128xf32>
    %c1_68 = arith.constant 1 : index
    %c0_69 = arith.constant 0 : index
    %c0_70 = arith.constant 0 : index
    %92 = vector.load %arg3[%c1_68, %c0_69, %c0_70] : memref<2x128x128xf32, #tpu.memory_space<vmem>>, vector<1x128x128xf32>
    %93 = vector.shape_cast %92 : vector<1x128x128xf32> to vector<128x128xf32>
    %cst_71 = arith.constant dense<0.000000e+00> : vector<8x128xf32>
    %94 = tpu.matmul %91, %93, %cst_71 {dimension_numbers = #tpu.dot_dimension_numbers<[1], [0], [0], [1], [0, 0, 1, 1], [], []>} : vector<8x128xf32>, vector<128x128xf32>, vector<8x128xf32> -> vector<8x128xf32>
    %c1_72 = arith.constant 1 : index
    %c0_73 = arith.constant 0 : index
    %c0_74 = arith.constant 0 : index
    %95 = vector.load %arg4[%c1_72, %c0_73, %c0_74] : memref<2x1x128xf32, #tpu.memory_space<vmem>>, vector<1x1x128xf32>
    %96 = vector.shape_cast %95 : vector<1x1x128xf32> to vector<1x128xf32>
    %97 = vector.broadcast %96 : vector<1x128xf32> to vector<8x128xf32>
    %98 = arith.addf %94, %97 : vector<8x128xf32>
    %99 = math.tanh %98 : vector<8x128xf32>
    %c4 = arith.constant 4 : index
    %c0_75 = arith.constant 0 : index
    %c0_76 = arith.constant 0 : index
    %100 = vector.load %arg5[%c4, %c0_75, %c0_76] : memref<8x8x128xf32, #tpu.memory_space<vmem>>, vector<1x8x128xf32>
    %101 = vector.shape_cast %100 : vector<1x8x128xf32> to vector<8x128xf32>
    %102 = vector.shape_cast %99 : vector<8x128xf32> to vector<1x8x128xf32>
    tpu.vector_store %arg5[%c4, %c0_75, %c0_76], %102 {strides = array<i32>} : memref<8x8x128xf32, #tpu.memory_space<vmem>>, vector<1x8x128xf32>,
    %103 = vector.extract_strided_slice %5 {offsets = [40, 0], sizes = [8, 128], strides = [1, 1]} : vector<64x128xf32> to vector<8x128xf32>
    %c0_77 = arith.constant 0 : index
    %c0_78 = arith.constant 0 : index
    %c0_79 = arith.constant 0 : index
    %104 = vector.load %arg3[%c0_77, %c0_78, %c0_79] : memref<2x128x128xf32, #tpu.memory_space<vmem>>, vector<1x128x128xf32>
    %105 = vector.shape_cast %104 : vector<1x128x128xf32> to vector<128x128xf32>
    %cst_80 = arith.constant dense<0.000000e+00> : vector<8x128xf32>
    %106 = tpu.matmul %89, %105, %cst_80 {dimension_numbers = #tpu.dot_dimension_numbers<[1], [0], [0], [1], [0, 0, 1, 1], [], []>} : vector<8x128xf32>, vector<128x128xf32>, vector<8x128xf32> -> vector<8x128xf32>
    %107 = arith.addf %103, %106 : vector<8x128xf32>
    %108 = math.tanh %107 : vector<8x128xf32>
    %c32_i32_81 = arith.constant 32 : i32
    %109 = tpu.dynamic_rotate %99 by %c32_i32_81 dim 1 : vector<8x128xf32>, i32 -> vector<8x128xf32>
    %110 = arith.addf %108, %109 : vector<8x128xf32>
    %c1_82 = arith.constant 1 : index
    %c0_83 = arith.constant 0 : index
    %c0_84 = arith.constant 0 : index
    %111 = vector.load %arg3[%c1_82, %c0_83, %c0_84] : memref<2x128x128xf32, #tpu.memory_space<vmem>>, vector<1x128x128xf32>
    %112 = vector.shape_cast %111 : vector<1x128x128xf32> to vector<128x128xf32>
    %cst_85 = arith.constant dense<0.000000e+00> : vector<8x128xf32>
    %113 = tpu.matmul %110, %112, %cst_85 {dimension_numbers = #tpu.dot_dimension_numbers<[1], [0], [0], [1], [0, 0, 1, 1], [], []>} : vector<8x128xf32>, vector<128x128xf32>, vector<8x128xf32> -> vector<8x128xf32>
    %c1_86 = arith.constant 1 : index
    %c0_87 = arith.constant 0 : index
    %c0_88 = arith.constant 0 : index
    %114 = vector.load %arg4[%c1_86, %c0_87, %c0_88] : memref<2x1x128xf32, #tpu.memory_space<vmem>>, vector<1x1x128xf32>
    %115 = vector.shape_cast %114 : vector<1x1x128xf32> to vector<1x128xf32>
    %116 = vector.broadcast %115 : vector<1x128xf32> to vector<8x128xf32>
    %117 = arith.addf %113, %116 : vector<8x128xf32>
    %118 = math.tanh %117 : vector<8x128xf32>
    %c5 = arith.constant 5 : index
    %c0_89 = arith.constant 0 : index
    %c0_90 = arith.constant 0 : index
    %119 = vector.load %arg5[%c5, %c0_89, %c0_90] : memref<8x8x128xf32, #tpu.memory_space<vmem>>, vector<1x8x128xf32>
    %120 = vector.shape_cast %119 : vector<1x8x128xf32> to vector<8x128xf32>
    %121 = vector.shape_cast %118 : vector<8x128xf32> to vector<1x8x128xf32>
    tpu.vector_store %arg5[%c5, %c0_89, %c0_90], %121 {strides = array<i32>} : memref<8x8x128xf32, #tpu.memory_space<vmem>>, vector<1x8x128xf32>,
    %122 = vector.extract_strided_slice %5 {offsets = [48, 0], sizes = [8, 128], strides = [1, 1]} : vector<64x128xf32> to vector<8x128xf32>
    %c0_91 = arith.constant 0 : index
    %c0_92 = arith.constant 0 : index
    %c0_93 = arith.constant 0 : index
    %123 = vector.load %arg3[%c0_91, %c0_92, %c0_93] : memref<2x128x128xf32, #tpu.memory_space<vmem>>, vector<1x128x128xf32>
    %124 = vector.shape_cast %123 : vector<1x128x128xf32> to vector<128x128xf32>
    %cst_94 = arith.constant dense<0.000000e+00> : vector<8x128xf32>
    %125 = tpu.matmul %108, %124, %cst_94 {dimension_numbers = #tpu.dot_dimension_numbers<[1], [0], [0], [1], [0, 0, 1, 1], [], []>} : vector<8x128xf32>, vector<128x128xf32>, vector<8x128xf32> -> vector<8x128xf32>
    %126 = arith.addf %122, %125 : vector<8x128xf32>
    %127 = math.tanh %126 : vector<8x128xf32>
    %c32_i32_95 = arith.constant 32 : i32
    %128 = tpu.dynamic_rotate %118 by %c32_i32_95 dim 1 : vector<8x128xf32>, i32 -> vector<8x128xf32>
    %129 = arith.addf %127, %128 : vector<8x128xf32>
    %c1_96 = arith.constant 1 : index
    %c0_97 = arith.constant 0 : index
    %c0_98 = arith.constant 0 : index
    %130 = vector.load %arg3[%c1_96, %c0_97, %c0_98] : memref<2x128x128xf32, #tpu.memory_space<vmem>>, vector<1x128x128xf32>
    %131 = vector.shape_cast %130 : vector<1x128x128xf32> to vector<128x128xf32>
    %cst_99 = arith.constant dense<0.000000e+00> : vector<8x128xf32>
    %132 = tpu.matmul %129, %131, %cst_99 {dimension_numbers = #tpu.dot_dimension_numbers<[1], [0], [0], [1], [0, 0, 1, 1], [], []>} : vector<8x128xf32>, vector<128x128xf32>, vector<8x128xf32> -> vector<8x128xf32>
    %c1_100 = arith.constant 1 : index
    %c0_101 = arith.constant 0 : index
    %c0_102 = arith.constant 0 : index
    %133 = vector.load %arg4[%c1_100, %c0_101, %c0_102] : memref<2x1x128xf32, #tpu.memory_space<vmem>>, vector<1x1x128xf32>
    %134 = vector.shape_cast %133 : vector<1x1x128xf32> to vector<1x128xf32>
    %135 = vector.broadcast %134 : vector<1x128xf32> to vector<8x128xf32>
    %136 = arith.addf %132, %135 : vector<8x128xf32>
    %137 = math.tanh %136 : vector<8x128xf32>
    %c6 = arith.constant 6 : index
    %c0_103 = arith.constant 0 : index
    %c0_104 = arith.constant 0 : index
    %138 = vector.load %arg5[%c6, %c0_103, %c0_104] : memref<8x8x128xf32, #tpu.memory_space<vmem>>, vector<1x8x128xf32>
    %139 = vector.shape_cast %138 : vector<1x8x128xf32> to vector<8x128xf32>
    %140 = vector.shape_cast %137 : vector<8x128xf32> to vector<1x8x128xf32>
    tpu.vector_store %arg5[%c6, %c0_103, %c0_104], %140 {strides = array<i32>} : memref<8x8x128xf32, #tpu.memory_space<vmem>>, vector<1x8x128xf32>,
    %141 = vector.extract_strided_slice %5 {offsets = [56, 0], sizes = [8, 128], strides = [1, 1]} : vector<64x128xf32> to vector<8x128xf32>
    %c0_105 = arith.constant 0 : index
    %c0_106 = arith.constant 0 : index
    %c0_107 = arith.constant 0 : index
    %142 = vector.load %arg3[%c0_105, %c0_106, %c0_107] : memref<2x128x128xf32, #tpu.memory_space<vmem>>, vector<1x128x128xf32>
    %143 = vector.shape_cast %142 : vector<1x128x128xf32> to vector<128x128xf32>
    %cst_108 = arith.constant dense<0.000000e+00> : vector<8x128xf32>
    %144 = tpu.matmul %127, %143, %cst_108 {dimension_numbers = #tpu.dot_dimension_numbers<[1], [0], [0], [1], [0, 0, 1, 1], [], []>} : vector<8x128xf32>, vector<128x128xf32>, vector<8x128xf32> -> vector<8x128xf32>
    %145 = arith.addf %141, %144 : vector<8x128xf32>
    %146 = math.tanh %145 : vector<8x128xf32>
    %c32_i32_109 = arith.constant 32 : i32
    %147 = tpu.dynamic_rotate %137 by %c32_i32_109 dim 1 : vector<8x128xf32>, i32 -> vector<8x128xf32>
    %148 = arith.addf %146, %147 : vector<8x128xf32>
    %c1_110 = arith.constant 1 : index
    %c0_111 = arith.constant 0 : index
    %c0_112 = arith.constant 0 : index
    %149 = vector.load %arg3[%c1_110, %c0_111, %c0_112] : memref<2x128x128xf32, #tpu.memory_space<vmem>>, vector<1x128x128xf32>
    %150 = vector.shape_cast %149 : vector<1x128x128xf32> to vector<128x128xf32>
    %cst_113 = arith.constant dense<0.000000e+00> : vector<8x128xf32>
    %151 = tpu.matmul %148, %150, %cst_113 {dimension_numbers = #tpu.dot_dimension_numbers<[1], [0], [0], [1], [0, 0, 1, 1], [], []>} : vector<8x128xf32>, vector<128x128xf32>, vector<8x128xf32> -> vector<8x128xf32>
    %c1_114 = arith.constant 1 : index
    %c0_115 = arith.constant 0 : index
    %c0_116 = arith.constant 0 : index
    %152 = vector.load %arg4[%c1_114, %c0_115, %c0_116] : memref<2x1x128xf32, #tpu.memory_space<vmem>>, vector<1x1x128xf32>
    %153 = vector.shape_cast %152 : vector<1x1x128xf32> to vector<1x128xf32>
    %154 = vector.broadcast %153 : vector<1x128xf32> to vector<8x128xf32>
    %155 = arith.addf %151, %154 : vector<8x128xf32>
    %156 = math.tanh %155 : vector<8x128xf32>
    %c7 = arith.constant 7 : index
    %c0_117 = arith.constant 0 : index
    %c0_118 = arith.constant 0 : index
    %157 = vector.load %arg5[%c7, %c0_117, %c0_118] : memref<8x8x128xf32, #tpu.memory_space<vmem>>, vector<1x8x128xf32>
    %158 = vector.shape_cast %157 : vector<1x8x128xf32> to vector<8x128xf32>
    %159 = vector.shape_cast %156 : vector<8x128xf32> to vector<1x8x128xf32>
    tpu.vector_store %arg5[%c7, %c0_117, %c0_118], %159 {strides = array<i32>} : memref<8x8x128xf32, #tpu.memory_space<vmem>>, vector<1x8x128xf32>,
    %c0_119 = arith.constant 0 : index
    %c0_120 = arith.constant 0 : index
    %c0_121 = arith.constant 0 : index
    %160 = vector.load %arg6[%c0_119, %c0_120, %c0_121] : memref<2x8x128xf32, #tpu.memory_space<vmem>>, vector<1x8x128xf32>
    %161 = vector.shape_cast %160 : vector<1x8x128xf32> to vector<8x128xf32>
    %162 = vector.shape_cast %146 : vector<8x128xf32> to vector<1x8x128xf32>
    tpu.vector_store %arg6[%c0_119, %c0_120, %c0_121], %162 {strides = array<i32>} : memref<2x8x128xf32, #tpu.memory_space<vmem>>, vector<1x8x128xf32>,
    %c1_122 = arith.constant 1 : index
    %c0_123 = arith.constant 0 : index
    %c0_124 = arith.constant 0 : index
    %163 = vector.load %arg6[%c1_122, %c0_123, %c0_124] : memref<2x8x128xf32, #tpu.memory_space<vmem>>, vector<1x8x128xf32>
    %164 = vector.shape_cast %163 : vector<1x8x128xf32> to vector<8x128xf32>
    %165 = vector.shape_cast %156 : vector<8x128xf32> to vector<1x8x128xf32>
    tpu.vector_store %arg6[%c1_122, %c0_123, %c0_124], %165 {strides = array<i32>} : memref<2x8x128xf32, #tpu.memory_space<vmem>>, vector<1x8x128xf32>,
    return
  }
}

</mosaic_0001>

<llo_original>
// kernel: encoder_forward.1
$region0: #{encoder_forward.1}
  #allocation0 [shape = 'u32[]', space=smem, size = 0x4, offset = 0x4, fixed_abs, tag = 'smem constant byte address 0x4 - core index']
  #allocation1 [shape = 'u32[144,128]{1,0:T(1,128)}', space=vmem, size = 0x12000, scoped, tag = 'internal scratch']
  %s0 = inlined_call_operand.vmem [shape: f32[64,128], index: 0, kind: input, shape index: {}]
  %s1 = inlined_call_operand.hbm [shape: f32[128,128], index: 1, kind: input, shape index: {}]
  %s2 = inlined_call_operand.vmem [shape: f32[1,128], index: 2, kind: input, shape index: {}]
  %s3 = inlined_call_operand.vmem [shape: f32[2,128,128], index: 3, kind: input, shape index: {}]
  %s4 = inlined_call_operand.vmem [shape: f32[2,1,128], index: 4, kind: input, shape index: {}]
  %s5 = inlined_call_operand.vmem [shape: f32[8,8,128], index: 5, kind: output, shape index: {0}]
  %s6 = inlined_call_operand.vmem [shape: f32[2,8,128], index: 6, kind: output, shape index: {1}]
  %7 = xla_tuple %s5, %s6
  %s8 = sld [smem:[#allocation0]]
  $region42: #{encoder_forward.1} parent=0
    _
  %s10 = ssub.s32 1, %s8
  %s11 = scalar_select 0, %s10, %s8
  $region1: #{encoder_forward.1} parent=0
    #allocation2 [shape = 'u8[65536]{0}', space=vmem, size = 0x10000, scoped, tag = 'input window, operand 1, single buffered']
    #allocation3 [shape = 's32[1]{0}', space=sflag, size = 0x4, scoped, tag = 'scoped memory for encoder_forward.1']
    %12 = vsyncpa [#allocation3], 0
    // Predicated region
    $region2: #{encoder_forward.1} parent=1 // pred_check
      _
    $region3: #{encoder_forward.1} parent=1 // pred_check_branch
      %14 = sbr.rel (0) target = $region5
    $region4: #{encoder_forward.1} parent=1 // pred_region
      _
    $region5: #{encoder_forward.1} parent=1 // pred_fallthru
      _
    // Predicated region
    $region6: #{encoder_forward.1} parent=1 // pred_check
      _
    $region7: #{encoder_forward.1} parent=1 // pred_check_branch
      %16 = sbr.rel (0) target = $region9
    $region8: #{encoder_forward.1} parent=1 // pred_region
      %s18 = ssub.s32 2048, 2048
      %19 = vsyncadd [#allocation3], %s18
      %s20 = sshll.u32 [#allocation2], 4
      %s21 = int_to_ptr.vmem [resolvable:$true] %s20
      %26 = dma.hbm_to_vmem [thread:$0]  %s1, 2048, %s21, [#allocation3], 128, 128, 8
    $region9: #{encoder_forward.1} parent=1 // pred_fallthru
      _
    // Predicated region
    $region10: #{encoder_forward.1} parent=1 // pred_check
      _
    $region11: #{encoder_forward.1} parent=1 // pred_check_branch
      %28 = sbr.rel (0) target = $region13
    $region12: #{encoder_forward.1} parent=1 // pred_region
      _
    $region13: #{encoder_forward.1} parent=1 // pred_fallthru
      _
    // Predicated region
    $region14: #{encoder_forward.1} parent=1 // pred_check
      _
    $region15: #{encoder_forward.1} parent=1 // pred_check_branch
      %30 = sbr.rel (0) target = $region17
    $region16: #{encoder_forward.1} parent=1 // pred_region
      _
    $region17: #{encoder_forward.1} parent=1 // pred_fallthru
      _
    // Predicated region
    $region18: #{encoder_forward.1} parent=1 // pred_check
      _
    $region19: #{encoder_forward.1} parent=1 // pred_check_branch
      %32 = sbr.rel (0) target = $region21
    $region20: #{encoder_forward.1} parent=1 // pred_region
      _
    $region21: #{encoder_forward.1} parent=1 // pred_fallthru
      _
    // Predicated region
    $region22: #{encoder_forward.1} parent=1 // pred_check
      _
    $region23: #{encoder_forward.1} parent=1 // pred_check_branch
      %34 = sbr.rel (0) target = $region25
    $region24: #{encoder_forward.1} parent=1 // pred_region
      %35 = dma.done [#allocation3], 2048
    $region25: #{encoder_forward.1} parent=1 // pred_fallthru
      _
    %v36 = vld [vmem:[%s0] sm:$0xff]
    %v37 = vld [vmem:[%s0 + $0x8] sm:$0xff]
    %v38 = vld [vmem:[%s0 + $0x10] sm:$0xff]
    %v39 = vld [vmem:[%s0 + $0x18] sm:$0xff]
    %v40 = vld [vmem:[%s0 + $0x20] sm:$0xff]
    %v41 = vld [vmem:[%s0 + $0x28] sm:$0xff]
    %v42 = vld [vmem:[%s0 + $0x30] sm:$0xff]
    %v43 = vld [vmem:[%s0 + $0x38] sm:$0xff]
    %v44 = vld [vmem:[#allocation2] sm:$0xff]
    %v45 = vld [vmem:[#allocation2 + $0x8] sm:$0xff]
    %v46 = vld [vmem:[#allocation2 + $0x10] sm:$0xff]
    %v47 = vld [vmem:[#allocation2 + $0x18] sm:$0xff]
    %v48 = vld [vmem:[#allocation2 + $0x20] sm:$0xff]
    %v49 = vld [vmem:[#allocation2 + $0x28] sm:$0xff]
    %v50 = vld [vmem:[#allocation2 + $0x30] sm:$0xff]
    %v51 = vld [vmem:[#allocation2 + $0x38] sm:$0xff]
    %v52 = vld [vmem:[#allocation2 + $0x40] sm:$0xff]
    %v53 = vld [vmem:[#allocation2 + $0x48] sm:$0xff]
    %v54 = vld [vmem:[#allocation2 + $0x50] sm:$0xff]
    %v55 = vld [vmem:[#allocation2 + $0x58] sm:$0xff]
    %v56 = vld [vmem:[#allocation2 + $0x60] sm:$0xff]
    %v57 = vld [vmem:[#allocation2 + $0x68] sm:$0xff]
    %v58 = vld [vmem:[#allocation2 + $0x70] sm:$0xff]
    %v59 = vld [vmem:[#allocation2 + $0x78] sm:$0xff]
    %v60 = vld [vmem:[%s2] sm:$0x1]
    %v62 = vlaneseq
    %v63 = vshrl.u32 %v62, 7
    %v64 = vsub.s32 0, %v63
    %v65 = vrot.slane %v60, %v64
    %67 = vmatprep.subr.mxu0 0.0
    %68 = vmatpush1.msra.mxu0 %v44
    %69 = vmatprep.subr.mxu0 0.0
    %70 = vmatpush1.msra.mxu0 %v45
    %71 = vmatprep.subr.mxu0 0.0
    %72 = vmatpush1.msra.mxu0 %v46
    %73 = vmatprep.subr.mxu0 0.0
    %74 = vmatpush1.msra.mxu0 %v47
    %75 = vmatprep.subr.mxu0 0.0
    %76 = vmatpush1.msra.mxu0 %v48
    %77 = vmatprep.subr.mxu0 0.0
    %78 = vmatpush1.msra.mxu0 %v49
    %79 = vmatprep.subr.mxu0 0.0
    %80 = vmatpush1.msra.mxu0 %v50
    %81 = vmatprep.subr.mxu0 0.0
    %82 = vmatpush1.msra.mxu0 %v51
    %83 = vmatprep.subr.mxu0 0.0
    %84 = vmatpush1.msra.mxu0 %v52
    %85 = vmatprep.subr.mxu0 0.0
    %86 = vmatpush1.msra.mxu0 %v53
    %87 = vmatprep.subr.mxu0 0.0
    %88 = vmatpush1.msra.mxu0 %v54
    %89 = vmatprep.subr.mxu0 0.0
    %90 = vmatpush1.msra.mxu0 %v55
    %91 = vmatprep.subr.mxu0 0.0
    %92 = vmatpush1.msra.mxu0 %v56
    %93 = vmatprep.subr.mxu0 0.0
    %94 = vmatpush1.msra.mxu0 %v57
    %95 = vmatprep.subr.mxu0 0.0
    %96 = vmatpush1.msra.mxu0 %v58
    %97 = vmatprep.subr.mxu0 0.0
    %98 = vmatpush1.msra.mxu0 %v59
    %99 = vmatprep.subr.mxu0 0.0
    %100 = vmatpush1.msra.mxu0 0.0
    %101 = vmatprep.subr.mxu0 0.0
    %102 = vmatpush1.msra.mxu0 0.0
    %103 = vmatprep.subr.mxu0 0.0
    %104 = vmatpush1.msra.mxu0 0.0
    %105 = vmatprep.subr.mxu0 0.0
    %106 = vmatpush1.msra.mxu0 0.0
    %107 = vmatprep.subr.mxu0 0.0
    %108 = vmatpush1.msra.mxu0 0.0
    %109 = vmatprep.subr.mxu0 0.0
    %110 = vmatpush1.msra.mxu0 0.0
    %111 = vmatprep.subr.mxu0 0.0
    %112 = vmatpush1.msra.mxu0 0.0
    %113 = vmatprep.subr.mxu0 0.0
    %114 = vmatpush1.msra.mxu0 0.0
    %115 = vmatprep.subr.mxu0 0.0
    %116 = vmatpush1.msra.mxu0 0.0
    %117 = vmatprep.subr.mxu0 0.0
    %118 = vmatpush1.msra.mxu0 0.0
    %119 = vmatprep.subr.mxu0 0.0
    %120 = vmatpush1.msra.mxu0 0.0
    %121 = vmatprep.subr.mxu0 0.0
    %122 = vmatpush1.msra.mxu0 0.0
    %123 = vmatprep.subr.mxu0 0.0
    %124 = vmatpush1.msra.mxu0 0.0
    %125 = vmatprep.subr.mxu0 0.0
    %126 = vmatpush1.msra.mxu0 0.0
    %127 = vmatprep.subr.mxu0 0.0
    %128 = vmatpush1.msra.mxu0 0.0
    %129 = vmatprep.subr.mxu0 0.0
    %130 = vmatpush1.msra.mxu0 0.0
    %131 = vmatprep.mubr.f32.mxu0 0.0
    %132 = vmatmul.mubr.f32.gmra.mrb[0].mxu0 %v36
    %v133 = vpop.f32.mrb[0].mxu0
    %v134 = vadd.f32 %v65, %v133
    %v135 = vpop.f32.mrb[0].mxu0
    %136 = vmatprep.mubr.f32.mxu0 0.0
    %137 = vmatmul.mubr.f32.gmra.mrb[0].mxu0 %v37
    %v138 = vpop.f32.mrb[0].mxu0
    %v139 = vadd.f32 %v65, %v138
    %v140 = vpop.f32.mrb[0].mxu0
    %141 = vmatprep.mubr.f32.mxu0 0.0
    %142 = vmatmul.mubr.f32.gmra.mrb[0].mxu0 %v38
    %v143 = vpop.f32.mrb[0].mxu0
    %v144 = vadd.f32 %v65, %v143
    %v145 = vpop.f32.mrb[0].mxu0
    %146 = vmatprep.mubr.f32.mxu0 0.0
    %147 = vmatmul.mubr.f32.gmra.mrb[0].mxu0 %v39
    %v148 = vpop.f32.mrb[0].mxu0
    %v149 = vadd.f32 %v65, %v148
    %v150 = vpop.f32.mrb[0].mxu0
    %151 = vmatprep.mubr.f32.mxu0 0.0
    %152 = vmatmul.mubr.f32.gmra.mrb[0].mxu0 %v40
    %v153 = vpop.f32.mrb[0].mxu0
    %v154 = vadd.f32 %v65, %v153
    %v155 = vpop.f32.mrb[0].mxu0
    %156 = vmatprep.mubr.f32.mxu0 0.0
    %157 = vmatmul.mubr.f32.gmra.mrb[0].mxu0 %v41
    %v158 = vpop.f32.mrb[0].mxu0
    %v159 = vadd.f32 %v65, %v158
    %v160 = vpop.f32.mrb[0].mxu0
    %161 = vmatprep.mubr.f32.mxu0 0.0
    %162 = vmatmul.mubr.f32.gmra.mrb[0].mxu0 %v42
    %v163 = vpop.f32.mrb[0].mxu0
    %v164 = vadd.f32 %v65, %v163
    %v165 = vpop.f32.mrb[0].mxu0
    %166 = vmatprep.mubr.f32.mxu0 0.0
    %167 = vmatmul.mubr.f32.gmra.mrb[0].mxu0 %v43
    %v168 = vpop.f32.mrb[0].mxu0
    %v169 = vadd.f32 %v65, %v168
    %v170 = vpop.f32.mrb[0].mxu0
    %171 = vdwg.mxu0
    %v172 = vld [vmem:[%s3] sm:$0xff]
    %v173 = vld [vmem:[%s3 + $0x8] sm:$0xff]
    %v174 = vld [vmem:[%s3 + $0x10] sm:$0xff]
    %v175 = vld [vmem:[%s3 + $0x18] sm:$0xff]
    %v176 = vld [vmem:[%s3 + $0x20] sm:$0xff]
    %v177 = vld [vmem:[%s3 + $0x28] sm:$0xff]
    %v178 = vld [vmem:[%s3 + $0x30] sm:$0xff]
    %v179 = vld [vmem:[%s3 + $0x38] sm:$0xff]
    %v180 = vld [vmem:[%s3 + $0x40] sm:$0xff]
    %v181 = vld [vmem:[%s3 + $0x48] sm:$0xff]
    %v182 = vld [vmem:[%s3 + $0x50] sm:$0xff]
    %v183 = vld [vmem:[%s3 + $0x58] sm:$0xff]
    %v184 = vld [vmem:[%s3 + $0x60] sm:$0xff]
    %v185 = vld [vmem:[%s3 + $0x68] sm:$0xff]
    %v186 = vld [vmem:[%s3 + $0x70] sm:$0xff]
    %v187 = vld [vmem:[%s3 + $0x78] sm:$0xff]
    %188 = vmatprep.subr.mxu0 0.0
    %189 = vmatpush1.msra.mxu0 %v172
    %190 = vmatprep.subr.mxu0 0.0
    %191 = vmatpush1.msra.mxu0 %v173
    %192 = vmatprep.subr.mxu0 0.0
    %193 = vmatpush1.msra.mxu0 %v174
    %194 = vmatprep.subr.mxu0 0.0
    %195 = vmatpush1.msra.mxu0 %v175
    %196 = vmatprep.subr.mxu0 0.0
    %197 = vmatpush1.msra.mxu0 %v176
    %198 = vmatprep.subr.mxu0 0.0
    %199 = vmatpush1.msra.mxu0 %v177
    %200 = vmatprep.subr.mxu0 0.0
    %201 = vmatpush1.msra.mxu0 %v178
    %202 = vmatprep.subr.mxu0 0.0
    %203 = vmatpush1.msra.mxu0 %v179
    %204 = vmatprep.subr.mxu0 0.0
    %205 = vmatpush1.msra.mxu0 %v180
    %206 = vmatprep.subr.mxu0 0.0
    %207 = vmatpush1.msra.mxu0 %v181
    %208 = vmatprep.subr.mxu0 0.0
    %209 = vmatpush1.msra.mxu0 %v182
    %210 = vmatprep.subr.mxu0 0.0
    %211 = vmatpush1.msra.mxu0 %v183
    %212 = vmatprep.subr.mxu0 0.0
    %213 = vmatpush1.msra.mxu0 %v184
    %214 = vmatprep.subr.mxu0 0.0
    %215 = vmatpush1.msra.mxu0 %v185
    %216 = vmatprep.subr.mxu0 0.0
    %217 = vmatpush1.msra.mxu0 %v186
    %218 = vmatprep.subr.mxu0 0.0
    %219 = vmatpush1.msra.mxu0 %v187
    %220 = vmatprep.subr.mxu0 0.0
    %221 = vmatpush1.msra.mxu0 0.0
    %222 = vmatprep.subr.mxu0 0.0
    %223 = vmatpush1.msra.mxu0 0.0
    %224 = vmatprep.subr.mxu0 0.0
    %225 = vmatpush1.msra.mxu0 0.0
    %226 = vmatprep.subr.mxu0 0.0
    %227 = vmatpush1.msra.mxu0 0.0
    %228 = vmatprep.subr.mxu0 0.0
    %229 = vmatpush1.msra.mxu0 0.0
    %230 = vmatprep.subr.mxu0 0.0
    %231 = vmatpush1.msra.mxu0 0.0
    %232 = vmatprep.subr.mxu0 0.0
    %233 = vmatpush1.msra.mxu0 0.0
    %234 = vmatprep.subr.mxu0 0.0
    %235 = vmatpush1.msra.mxu0 0.0
    %236 = vmatprep.subr.mxu0 0.0
    %237 = vmatpush1.msra.mxu0 0.0
    %238 = vmatprep.subr.mxu0 0.0
    %239 = vmatpush1.msra.mxu0 0.0
    %240 = vmatprep.subr.mxu0 0.0
    %241 = vmatpush1.msra.mxu0 0.0
    %242 = vmatprep.subr.mxu0 0.0
    %243 = vmatpush1.msra.mxu0 0.0
    %244 = vmatprep.subr.mxu0 0.0
    %245 = vmatpush1.msra.mxu0 0.0
    %246 = vmatprep.subr.mxu0 0.0
    %247 = vmatpush1.msra.mxu0 0.0
    %248 = vmatprep.subr.mxu0 0.0
    %249 = vmatpush1.msra.mxu0 0.0
    %250 = vmatprep.subr.mxu0 0.0
    %251 = vmatpush1.msra.mxu0 0.0
    %252 = vmatprep.mubr.f32.mxu0 0.0
    %253 = vmatmul.mubr.f32.gmra.mrb[0].mxu0 0.0
    %v254 = vpop.f32.mrb[0].mxu0
    %v255 = vadd.f32 0.0, %v254
    %v256 = vpop.f32.mrb[0].mxu0
    %257 = vdwg.mxu0
    %v258 = vadd.f32 %v134, %v255
    %v259 = vtanh.pop %v258
    %260 = vrot.lane.b32.xlu0 0.0, 32
    %v261 = vpop.permute.xlu0 %260
    %v262 = vadd.f32 %v259, %v261
    %s263 = scalar_lea.vmem %s3, 128
    %v264 = vld [vmem:[%s263] sm:$0xff]
    %v265 = vld [vmem:[%s263 + $0x8] sm:$0xff]
    %v266 = vld [vmem:[%s263 + $0x10] sm:$0xff]
    %v267 = vld [vmem:[%s263 + $0x18] sm:$0xff]
    %v268 = vld [vmem:[%s263 + $0x20] sm:$0xff]
    %v269 = vld [vmem:[%s263 + $0x28] sm:$0xff]
    %v270 = vld [vmem:[%s263 + $0x30] sm:$0xff]
    %v271 = vld [vmem:[%s263 + $0x38] sm:$0xff]
    %v272 = vld [vmem:[%s263 + $0x40] sm:$0xff]
    %v273 = vld [vmem:[%s263 + $0x48] sm:$0xff]
    %v274 = vld [vmem:[%s263 + $0x50] sm:$0xff]
    %v275 = vld [vmem:[%s263 + $0x58] sm:$0xff]
    %v276 = vld [vmem:[%s263 + $0x60] sm:$0xff]
    %v277 = vld [vmem:[%s263 + $0x68] sm:$0xff]
    %v278 = vld [vmem:[%s263 + $0x70] sm:$0xff]
    %v279 = vld [vmem:[%s263 + $0x78] sm:$0xff]
    %s280 = scalar_lea.vmem %s4, 1
    %v281 = vld [vmem:[%s280] sm:$0x1]
    %v283 = vlaneseq
    %v284 = vshrl.u32 %v283, 7
    %v285 = vsub.s32 0, %v284
    %v286 = vrot.slane %v281, %v285
    %288 = vmatprep.subr.mxu0 0.0
    %289 = vmatpush1.msra.mxu0 %v264
    %290 = vmatprep.subr.mxu0 0.0
    %291 = vmatpush1.msra.mxu0 %v265
    %292 = vmatprep.subr.mxu0 0.0
    %293 = vmatpush1.msra.mxu0 %v266
    %294 = vmatprep.subr.mxu0 0.0
    %295 = vmatpush1.msra.mxu0 %v267
    %296 = vmatprep.subr.mxu0 0.0
    %297 = vmatpush1.msra.mxu0 %v268
    %298 = vmatprep.subr.mxu0 0.0
    %299 = vmatpush1.msra.mxu0 %v269
    %300 = vmatprep.subr.mxu0 0.0
    %301 = vmatpush1.msra.mxu0 %v270
    %302 = vmatprep.subr.mxu0 0.0
    %303 = vmatpush1.msra.mxu0 %v271
    %304 = vmatprep.subr.mxu0 0.0
    %305 = vmatpush1.msra.mxu0 %v272
    %306 = vmatprep.subr.mxu0 0.0
    %307 = vmatpush1.msra.mxu0 %v273
    %308 = vmatprep.subr.mxu0 0.0
    %309 = vmatpush1.msra.mxu0 %v274
    %310 = vmatprep.subr.mxu0 0.0
    %311 = vmatpush1.msra.mxu0 %v275
    %312 = vmatprep.subr.mxu0 0.0
    %313 = vmatpush1.msra.mxu0 %v276
    %314 = vmatprep.subr.mxu0 0.0
    %315 = vmatpush1.msra.mxu0 %v277
    %316 = vmatprep.subr.mxu0 0.0
    %317 = vmatpush1.msra.mxu0 %v278
    %318 = vmatprep.subr.mxu0 0.0
    %319 = vmatpush1.msra.mxu0 %v279
    %320 = vmatprep.subr.mxu0 0.0
    %321 = vmatpush1.msra.mxu0 0.0
    %322 = vmatprep.subr.mxu0 0.0
    %323 = vmatpush1.msra.mxu0 0.0
    %324 = vmatprep.subr.mxu0 0.0
    %325 = vmatpush1.msra.mxu0 0.0
    %326 = vmatprep.subr.mxu0 0.0
    %327 = vmatpush1.msra.mxu0 0.0
    %328 = vmatprep.subr.mxu0 0.0
    %329 = vmatpush1.msra.mxu0 0.0
    %330 = vmatprep.subr.mxu0 0.0
    %331 = vmatpush1.msra.mxu0 0.0
    %332 = vmatprep.subr.mxu0 0.0
    %333 = vmatpush1.msra.mxu0 0.0
    %334 = vmatprep.subr.mxu0 0.0
    %335 = vmatpush1.msra.mxu0 0.0
    %336 = vmatprep.subr.mxu0 0.0
    %337 = vmatpush1.msra.mxu0 0.0
    %338 = vmatprep.subr.mxu0 0.0
    %339 = vmatpush1.msra.mxu0 0.0
    %340 = vmatprep.subr.mxu0 0.0
    %341 = vmatpush1.msra.mxu0 0.0
    %342 = vmatprep.subr.mxu0 0.0
    %343 = vmatpush1.msra.mxu0 0.0
    %344 = vmatprep.subr.mxu0 0.0
    %345 = vmatpush1.msra.mxu0 0.0
    %346 = vmatprep.subr.mxu0 0.0
    %347 = vmatpush1.msra.mxu0 0.0
    %348 = vmatprep.subr.mxu0 0.0
    %349 = vmatpush1.msra.mxu0 0.0
    %350 = vmatprep.subr.mxu0 0.0
    %351 = vmatpush1.msra.mxu0 0.0
    %352 = vmatprep.mubr.f32.mxu0 0.0
    %353 = vmatmul.mubr.f32.gmra.mrb[0].mxu0 %v262
    %v354 = vpop.f32.mrb[0].mxu0
    %v355 = vadd.f32 %v286, %v354
    %v356 = vpop.f32.mrb[0].mxu0
    %357 = vdwg.mxu0
    %v358 = vtanh.pop %v355
    %359 = vst [vmem:[%s5] sm:$0xff] %v358
    %v360 = vld [vmem:[%s3] sm:$0xff]
    %v361 = vld [vmem:[%s3 + $0x8] sm:$0xff]
    %v362 = vld [vmem:[%s3 + $0x10] sm:$0xff]
    %v363 = vld [vmem:[%s3 + $0x18] sm:$0xff]
    %v364 = vld [vmem:[%s3 + $0x20] sm:$0xff]
    %v365 = vld [vmem:[%s3 + $0x28] sm:$0xff]
    %v366 = vld [vmem:[%s3 + $0x30] sm:$0xff]
    %v367 = vld [vmem:[%s3 + $0x38] sm:$0xff]
    %v368 = vld [vmem:[%s3 + $0x40] sm:$0xff]
    %v369 = vld [vmem:[%s3 + $0x48] sm:$0xff]
    %v370 = vld [vmem:[%s3 + $0x50] sm:$0xff]
    %v371 = vld [vmem:[%s3 + $0x58] sm:$0xff]
    %v372 = vld [vmem:[%s3 + $0x60] sm:$0xff]
    %v373 = vld [vmem:[%s3 + $0x68] sm:$0xff]
    %v374 = vld [vmem:[%s3 + $0x70] sm:$0xff]
    %v375 = vld [vmem:[%s3 + $0x78] sm:$0xff]
    %376 = vmatprep.subr.mxu0 0.0
    %377 = vmatpush1.msra.mxu0 %v360
    %378 = vmatprep.subr.mxu0 0.0
    %379 = vmatpush1.msra.mxu0 %v361
    %380 = vmatprep.subr.mxu0 0.0
    %381 = vmatpush1.msra.mxu0 %v362
    %382 = vmatprep.subr.mxu0 0.0
    %383 = vmatpush1.msra.mxu0 %v363
    %384 = vmatprep.subr.mxu0 0.0
    %385 = vmatpush1.msra.mxu0 %v364
    %386 = vmatprep.subr.mxu0 0.0
    %387 = vmatpush1.msra.mxu0 %v365
    %388 = vmatprep.subr.mxu0 0.0
    %389 = vmatpush1.msra.mxu0 %v366
    %390 = vmatprep.subr.mxu0 0.0
    %391 = vmatpush1.msra.mxu0 %v367
    %392 = vmatprep.subr.mxu0 0.0
    %393 = vmatpush1.msra.mxu0 %v368
    %394 = vmatprep.subr.mxu0 0.0
    %395 = vmatpush1.msra.mxu0 %v369
    %396 = vmatprep.subr.mxu0 0.0
    %397 = vmatpush1.msra.mxu0 %v370
    %398 = vmatprep.subr.mxu0 0.0
    %399 = vmatpush1.msra.mxu0 %v371
    %400 = vmatprep.subr.mxu0 0.0
    %401 = vmatpush1.msra.mxu0 %v372
    %402 = vmatprep.subr.mxu0 0.0
    %403 = vmatpush1.msra.mxu0 %v373
    %404 = vmatprep.subr.mxu0 0.0
    %405 = vmatpush1.msra.mxu0 %v374
    %406 = vmatprep.subr.mxu0 0.0
    %407 = vmatpush1.msra.mxu0 %v375
    %408 = vmatprep.subr.mxu0 0.0
    %409 = vmatpush1.msra.mxu0 0.0
    %410 = vmatprep.subr.mxu0 0.0
    %411 = vmatpush1.msra.mxu0 0.0
    %412 = vmatprep.subr.mxu0 0.0
    %413 = vmatpush1.msra.mxu0 0.0
    %414 = vmatprep.subr.mxu0 0.0
    %415 = vmatpush1.msra.mxu0 0.0
    %416 = vmatprep.subr.mxu0 0.0
    %417 = vmatpush1.msra.mxu0 0.0
    %418 = vmatprep.subr.mxu0 0.0
    %419 = vmatpush1.msra.mxu0 0.0
    %420 = vmatprep.subr.mxu0 0.0
    %421 = vmatpush1.msra.mxu0 0.0
    %422 = vmatprep.subr.mxu0 0.0
    %423 = vmatpush1.msra.mxu0 0.0
    %424 = vmatprep.subr.mxu0 0.0
    %425 = vmatpush1.msra.mxu0 0.0
    %426 = vmatprep.subr.mxu0 0.0
    %427 = vmatpush1.msra.mxu0 0.0
    %428 = vmatprep.subr.mxu0 0.0
    %429 = vmatpush1.msra.mxu0 0.0
    %430 = vmatprep.subr.mxu0 0.0
    %431 = vmatpush1.msra.mxu0 0.0
    %432 = vmatprep.subr.mxu0 0.0
    %433 = vmatpush1.msra.mxu0 0.0
    %434 = vmatprep.subr.mxu0 0.0
    %435 = vmatpush1.msra.mxu0 0.0
    %436 = vmatprep.subr.mxu0 0.0
    %437 = vmatpush1.msra.mxu0 0.0
    %438 = vmatprep.subr.mxu0 0.0
    %439 = vmatpush1.msra.mxu0 0.0
    %440 = vmatprep.mubr.f32.mxu0 0.0
    %441 = vmatmul.mubr.f32.gmra.mrb[0].mxu0 %v259
    %v442 = vpop.f32.mrb[0].mxu0
    %v443 = vadd.f32 0.0, %v442
    %v444 = vpop.f32.mrb[0].mxu0
    %445 = vdwg.mxu0
    %v446 = vadd.f32 %v139, %v443
    %v447 = vtanh.pop %v446
    %448 = vrot.lane.b32.xlu0 %v358, 32
    %v449 = vpop.permute.xlu0 %448
    %v450 = vadd.f32 %v447, %v449
    %v451 = vld [vmem:[%s263] sm:$0xff]
    %v452 = vld [vmem:[%s263 + $0x8] sm:$0xff]
    %v453 = vld [vmem:[%s263 + $0x10] sm:$0xff]
    %v454 = vld [vmem:[%s263 + $0x18] sm:$0xff]
    %v455 = vld [vmem:[%s263 + $0x20] sm:$0xff]
    %v456 = vld [vmem:[%s263 + $0x28] sm:$0xff]
    %v457 = vld [vmem:[%s263 + $0x30] sm:$0xff]
    %v458 = vld [vmem:[%s263 + $0x38] sm:$0xff]
    %v459 = vld [vmem:[%s263 + $0x40] sm:$0xff]
    %v460 = vld [vmem:[%s263 + $0x48] sm:$0xff]
    %v461 = vld [vmem:[%s263 + $0x50] sm:$0xff]
    %v462 = vld [vmem:[%s263 + $0x58] sm:$0xff]
    %v463 = vld [vmem:[%s263 + $0x60] sm:$0xff]
    %v464 = vld [vmem:[%s263 + $0x68] sm:$0xff]
    %v465 = vld [vmem:[%s263 + $0x70] sm:$0xff]
    %v466 = vld [vmem:[%s263 + $0x78] sm:$0xff]
    %v467 = vld [vmem:[%s280] sm:$0x1]
    %v469 = vlaneseq
    %v470 = vshrl.u32 %v469, 7
    %v471 = vsub.s32 0, %v470
    %v472 = vrot.slane %v467, %v471
    %474 = vmatprep.subr.mxu0 0.0
    %475 = vmatpush1.msra.mxu0 %v451
    %476 = vmatprep.subr.mxu0 0.0
    %477 = vmatpush1.msra.mxu0 %v452
    %478 = vmatprep.subr.mxu0 0.0
    %479 = vmatpush1.msra.mxu0 %v453
    %480 = vmatprep.subr.mxu0 0.0
    %481 = vmatpush1.msra.mxu0 %v454
    %482 = vmatprep.subr.mxu0 0.0
    %483 = vmatpush1.msra.mxu0 %v455
    %484 = vmatprep.subr.mxu0 0.0
    %485 = vmatpush1.msra.mxu0 %v456
    %486 = vmatprep.subr.mxu0 0.0
    %487 = vmatpush1.msra.mxu0 %v457
    %488 = vmatprep.subr.mxu0 0.0
    %489 = vmatpush1.msra.mxu0 %v458
    %490 = vmatprep.subr.mxu0 0.0
    %491 = vmatpush1.msra.mxu0 %v459
    %492 = vmatprep.subr.mxu0 0.0
    %493 = vmatpush1.msra.mxu0 %v460
    %494 = vmatprep.subr.mxu0 0.0
    %495 = vmatpush1.msra.mxu0 %v461
    %496 = vmatprep.subr.mxu0 0.0
    %497 = vmatpush1.msra.mxu0 %v462
    %498 = vmatprep.subr.mxu0 0.0
    %499 = vmatpush1.msra.mxu0 %v463
    %500 = vmatprep.subr.mxu0 0.0
    %501 = vmatpush1.msra.mxu0 %v464
    %502 = vmatprep.subr.mxu0 0.0
    %503 = vmatpush1.msra.mxu0 %v465
    %504 = vmatprep.subr.mxu0 0.0
    %505 = vmatpush1.msra.mxu0 %v466
    %506 = vmatprep.subr.mxu0 0.0
    %507 = vmatpush1.msra.mxu0 0.0
    %508 = vmatprep.subr.mxu0 0.0
    %509 = vmatpush1.msra.mxu0 0.0
    %510 = vmatprep.subr.mxu0 0.0
    %511 = vmatpush1.msra.mxu0 0.0
    %512 = vmatprep.subr.mxu0 0.0
    %513 = vmatpush1.msra.mxu0 0.0
    %514 = vmatprep.subr.mxu0 0.0
    %515 = vmatpush1.msra.mxu0 0.0
    %516 = vmatprep.subr.mxu0 0.0
    %517 = vmatpush1.msra.mxu0 0.0
    %518 = vmatprep.subr.mxu0 0.0
    %519 = vmatpush1.msra.mxu0 0.0
    %520 = vmatprep.subr.mxu0 0.0
    %521 = vmatpush1.msra.mxu0 0.0
    %522 = vmatprep.subr.mxu0 0.0
    %523 = vmatpush1.msra.mxu0 0.0
    %524 = vmatprep.subr.mxu0 0.0
    %525 = vmatpush1.msra.mxu0 0.0
    %526 = vmatprep.subr.mxu0 0.0
    %527 = vmatpush1.msra.mxu0 0.0
    %528 = vmatprep.subr.mxu0 0.0
    %529 = vmatpush1.msra.mxu0 0.0
    %530 = vmatprep.subr.mxu0 0.0
    %531 = vmatpush1.msra.mxu0 0.0
    %532 = vmatprep.subr.mxu0 0.0
    %533 = vmatpush1.msra.mxu0 0.0
    %534 = vmatprep.subr.mxu0 0.0
    %535 = vmatpush1.msra.mxu0 0.0
    %536 = vmatprep.subr.mxu0 0.0
    %537 = vmatpush1.msra.mxu0 0.0
    %538 = vmatprep.mubr.f32.mxu0 0.0
    %539 = vmatmul.mubr.f32.gmra.mrb[0].mxu0 %v450
    %v540 = vpop.f32.mrb[0].mxu0
    %v541 = vadd.f32 %v472, %v540
    %v542 = vpop.f32.mrb[0].mxu0
    %543 = vdwg.mxu0
    %v544 = vtanh.pop %v541
    %s545 = scalar_lea.vmem %s5, 8
    %546 = vst [vmem:[%s545] sm:$0xff] %v544
    %v547 = vld [vmem:[%s3] sm:$0xff]
    %v548 = vld [vmem:[%s3 + $0x8] sm:$0xff]
    %v549 = vld [vmem:[%s3 + $0x10] sm:$0xff]
    %v550 = vld [vmem:[%s3 + $0x18] sm:$0xff]
    %v551 = vld [vmem:[%s3 + $0x20] sm:$0xff]
    %v552 = vld [vmem:[%s3 + $0x28] sm:$0xff]
    %v553 = vld [vmem:[%s3 + $0x30] sm:$0xff]
    %v554 = vld [vmem:[%s3 + $0x38] sm:$0xff]
    %v555 = vld [vmem:[%s3 + $0x40] sm:$0xff]
    %v556 = vld [vmem:[%s3 + $0x48] sm:$0xff]
    %v557 = vld [vmem:[%s3 + $0x50] sm:$0xff]
    %v558 = vld [vmem:[%s3 + $0x58] sm:$0xff]
    %v559 = vld [vmem:[%s3 + $0x60] sm:$0xff]
    %v560 = vld [vmem:[%s3 + $0x68] sm:$0xff]
    %v561 = vld [vmem:[%s3 + $0x70] sm:$0xff]
    %v562 = vld [vmem:[%s3 + $0x78] sm:$0xff]
    %563 = vmatprep.subr.mxu0 0.0
    %564 = vmatpush1.msra.mxu0 %v547
    %565 = vmatprep.subr.mxu0 0.0
    %566 = vmatpush1.msra.mxu0 %v548
    %567 = vmatprep.subr.mxu0 0.0
    %568 = vmatpush1.msra.mxu0 %v549
    %569 = vmatprep.subr.mxu0 0.0
    %570 = vmatpush1.msra.mxu0 %v550
    %571 = vmatprep.subr.mxu0 0.0
    %572 = vmatpush1.msra.mxu0 %v551
    %573 = vmatprep.subr.mxu0 0.0
    %574 = vmatpush1.msra.mxu0 %v552
    %575 = vmatprep.subr.mxu0 0.0
    %576 = vmatpush1.msra.mxu0 %v553
    %577 = vmatprep.subr.mxu0 0.0
    %578 = vmatpush1.msra.mxu0 %v554
    %579 = vmatprep.subr.mxu0 0.0
    %580 = vmatpush1.msra.mxu0 %v555
    %581 = vmatprep.subr.mxu0 0.0
    %582 = vmatpush1.msra.mxu0 %v556
    %583 = vmatprep.subr.mxu0 0.0
    %584 = vmatpush1.msra.mxu0 %v557
    %585 = vmatprep.subr.mxu0 0.0
    %586 = vmatpush1.msra.mxu0 %v558
    %587 = vmatprep.subr.mxu0 0.0
    %588 = vmatpush1.msra.mxu0 %v559
    %589 = vmatprep.subr.mxu0 0.0
    %590 = vmatpush1.msra.mxu0 %v560
    %591 = vmatprep.subr.mxu0 0.0
    %592 = vmatpush1.msra.mxu0 %v561
    %593 = vmatprep.subr.mxu0 0.0
    %594 = vmatpush1.msra.mxu0 %v562
    %595 = vmatprep.subr.mxu0 0.0
    %596 = vmatpush1.msra.mxu0 0.0
    %597 = vmatprep.subr.mxu0 0.0
    %598 = vmatpush1.msra.mxu0 0.0
    %599 = vmatprep.subr.mxu0 0.0
    %600 = vmatpush1.msra.mxu0 0.0
    %601 = vmatprep.subr.mxu0 0.0
    %602 = vmatpush1.msra.mxu0 0.0
    %603 = vmatprep.subr.mxu0 0.0
    %604 = vmatpush1.msra.mxu0 0.0
    %605 = vmatprep.subr.mxu0 0.0
    %606 = vmatpush1.msra.mxu0 0.0
    %607 = vmatprep.subr.mxu0 0.0
    %608 = vmatpush1.msra.mxu0 0.0
    %609 = vmatprep.subr.mxu0 0.0
    %610 = vmatpush1.msra.mxu0 0.0
    %611 = vmatprep.subr.mxu0 0.0
    %612 = vmatpush1.msra.mxu0 0.0
    %613 = vmatprep.subr.mxu0 0.0
    %614 = vmatpush1.msra.mxu0 0.0
    %615 = vmatprep.subr.mxu0 0.0
    %616 = vmatpush1.msra.mxu0 0.0
    %617 = vmatprep.subr.mxu0 0.0
    %618 = vmatpush1.msra.mxu0 0.0
    %619 = vmatprep.subr.mxu0 0.0
    %620 = vmatpush1.msra.mxu0 0.0
    %621 = vmatprep.subr.mxu0 0.0
    %622 = vmatpush1.msra.mxu0 0.0
    %623 = vmatprep.subr.mxu0 0.0
    %624 = vmatpush1.msra.mxu0 0.0
    %625 = vmatprep.subr.mxu0 0.0
    %626 = vmatpush1.msra.mxu0 0.0
    %627 = vmatprep.mubr.f32.mxu0 0.0
    %628 = vmatmul.mubr.f32.gmra.mrb[0].mxu0 %v447
    %v629 = vpop.f32.mrb[0].mxu0
    %v630 = vadd.f32 0.0, %v629
    %v631 = vpop.f32.mrb[0].mxu0
    %632 = vdwg.mxu0
    %v633 = vadd.f32 %v144, %v630
    %v634 = vtanh.pop %v633
    %635 = vrot.lane.b32.xlu0 %v544, 32
    %v636 = vpop.permute.xlu0 %635
    %v637 = vadd.f32 %v634, %v636
    %v638 = vld [vmem:[%s263] sm:$0xff]
    %v639 = vld [vmem:[%s263 + $0x8] sm:$0xff]
    %v640 = vld [vmem:[%s263 + $0x10] sm:$0xff]
    %v641 = vld [vmem:[%s263 + $0x18] sm:$0xff]
    %v642 = vld [vmem:[%s263 + $0x20] sm:$0xff]
    %v643 = vld [vmem:[%s263 + $0x28] sm:$0xff]
    %v644 = vld [vmem:[%s263 + $0x30] sm:$0xff]
    %v645 = vld [vmem:[%s263 + $0x38] sm:$0xff]
    %v646 = vld [vmem:[%s263 + $0x40] sm:$0xff]
    %v647 = vld [vmem:[%s263 + $0x48] sm:$0xff]
    %v648 = vld [vmem:[%s263 + $0x50] sm:$0xff]
    %v649 = vld [vmem:[%s263 + $0x58] sm:$0xff]
    %v650 = vld [vmem:[%s263 + $0x60] sm:$0xff]
    %v651 = vld [vmem:[%s263 + $0x68] sm:$0xff]
    %v652 = vld [vmem:[%s263 + $0x70] sm:$0xff]
    %v653 = vld [vmem:[%s263 + $0x78] sm:$0xff]
    %v654 = vld [vmem:[%s280] sm:$0x1]
    %v656 = vlaneseq
    %v657 = vshrl.u32 %v656, 7
    %v658 = vsub.s32 0, %v657
    %v659 = vrot.slane %v654, %v658
    %661 = vmatprep.subr.mxu0 0.0
    %662 = vmatpush1.msra.mxu0 %v638
    %663 = vmatprep.subr.mxu0 0.0
    %664 = vmatpush1.msra.mxu0 %v639
    %665 = vmatprep.subr.mxu0 0.0
    %666 = vmatpush1.msra.mxu0 %v640
    %667 = vmatprep.subr.mxu0 0.0
    %668 = vmatpush1.msra.mxu0 %v641
    %669 = vmatprep.subr.mxu0 0.0
    %670 = vmatpush1.msra.mxu0 %v642
    %671 = vmatprep.subr.mxu0 0.0
    %672 = vmatpush1.msra.mxu0 %v643
    %673 = vmatprep.subr.mxu0 0.0
    %674 = vmatpush1.msra.mxu0 %v644
    %675 = vmatprep.subr.mxu0 0.0
    %676 = vmatpush1.msra.mxu0 %v645
    %677 = vmatprep.subr.mxu0 0.0
    %678 = vmatpush1.msra.mxu0 %v646
    %679 = vmatprep.subr.mxu0 0.0
    %680 = vmatpush1.msra.mxu0 %v647
    %681 = vmatprep.subr.mxu0 0.0
    %682 = vmatpush1.msra.mxu0 %v648
    %683 = vmatprep.subr.mxu0 0.0
    %684 = vmatpush1.msra.mxu0 %v649
    %685 = vmatprep.subr.mxu0 0.0
    %686 = vmatpush1.msra.mxu0 %v650
    %687 = vmatprep.subr.mxu0 0.0
    %688 = vmatpush1.msra.mxu0 %v651
    %689 = vmatprep.subr.mxu0 0.0
    %690 = vmatpush1.msra.mxu0 %v652
    %691 = vmatprep.subr.mxu0 0.0
    %692 = vmatpush1.msra.mxu0 %v653
    %693 = vmatprep.subr.mxu0 0.0
    %694 = vmatpush1.msra.mxu0 0.0
    %695 = vmatprep.subr.mxu0 0.0
    %696 = vmatpush1.msra.mxu0 0.0
    %697 = vmatprep.subr.mxu0 0.0
    %698 = vmatpush1.msra.mxu0 0.0
    %699 = vmatprep.subr.mxu0 0.0
    %700 = vmatpush1.msra.mxu0 0.0
    %701 = vmatprep.subr.mxu0 0.0
    %702 = vmatpush1.msra.mxu0 0.0
    %703 = vmatprep.subr.mxu0 0.0
    %704 = vmatpush1.msra.mxu0 0.0
    %705 = vmatprep.subr.mxu0 0.0
    %706 = vmatpush1.msra.mxu0 0.0
    %707 = vmatprep.subr.mxu0 0.0
    %708 = vmatpush1.msra.mxu0 0.0
    %709 = vmatprep.subr.mxu0 0.0
    %710 = vmatpush1.msra.mxu0 0.0
    %711 = vmatprep.subr.mxu0 0.0
    %712 = vmatpush1.msra.mxu0 0.0
    %713 = vmatprep.subr.mxu0 0.0
    %714 = vmatpush1.msra.mxu0 0.0
    %715 = vmatprep.subr.mxu0 0.0
    %716 = vmatpush1.msra.mxu0 0.0
    %717 = vmatprep.subr.mxu0 0.0
    %718 = vmatpush1.msra.mxu0 0.0
    %719 = vmatprep.subr.mxu0 0.0
    %720 = vmatpush1.msra.mxu0 0.0
    %721 = vmatprep.subr.mxu0 0.0
    %722 = vmatpush1.msra.mxu0 0.0
    %723 = vmatprep.subr.mxu0 0.0
    %724 = vmatpush1.msra.mxu0 0.0
    %725 = vmatprep.mubr.f32.mxu0 0.0
    %726 = vmatmul.mubr.f32.gmra.mrb[0].mxu0 %v637
    %v727 = vpop.f32.mrb[0].mxu0
    %v728 = vadd.f32 %v659, %v727
    %v729 = vpop.f32.mrb[0].mxu0
    %730 = vdwg.mxu0
    %v731 = vtanh.pop %v728
    %s732 = scalar_lea.vmem %s5, 16
    %733 = vst [vmem:[%s732] sm:$0xff] %v731
    %v734 = vld [vmem:[%s3] sm:$0xff]
    %v735 = vld [vmem:[%s3 + $0x8] sm:$0xff]
    %v736 = vld [vmem:[%s3 + $0x10] sm:$0xff]
    %v737 = vld [vmem:[%s3 + $0x18] sm:$0xff]
    %v738 = vld [vmem:[%s3 + $0x20] sm:$0xff]
    %v739 = vld [vmem:[%s3 + $0x28] sm:$0xff]
    %v740 = vld [vmem:[%s3 + $0x30] sm:$0xff]
    %v741 = vld [vmem:[%s3 + $0x38] sm:$0xff]
    %v742 = vld [vmem:[%s3 + $0x40] sm:$0xff]
    %v743 = vld [vmem:[%s3 + $0x48] sm:$0xff]
    %v744 = vld [vmem:[%s3 + $0x50] sm:$0xff]
    %v745 = vld [vmem:[%s3 + $0x58] sm:$0xff]
    %v746 = vld [vmem:[%s3 + $0x60] sm:$0xff]
    %v747 = vld [vmem:[%s3 + $0x68] sm:$0xff]
    %v748 = vld [vmem:[%s3 + $0x70] sm:$0xff]
    %v749 = vld [vmem:[%s3 + $0x78] sm:$0xff]
    %750 = vmatprep.subr.mxu0 0.0
    %751 = vmatpush1.msra.mxu0 %v734
    %752 = vmatprep.subr.mxu0 0.0
    %753 = vmatpush1.msra.mxu0 %v735
    %754 = vmatprep.subr.mxu0 0.0
    %755 = vmatpush1.msra.mxu0 %v736
    %756 = vmatprep.subr.mxu0 0.0
    %757 = vmatpush1.msra.mxu0 %v737
    %758 = vmatprep.subr.mxu0 0.0
    %759 = vmatpush1.msra.mxu0 %v738
    %760 = vmatprep.subr.mxu0 0.0
    %761 = vmatpush1.msra.mxu0 %v739
    %762 = vmatprep.subr.mxu0 0.0
    %763 = vmatpush1.msra.mxu0 %v740
    %764 = vmatprep.subr.mxu0 0.0
    %765 = vmatpush1.msra.mxu0 %v741
    %766 = vmatprep.subr.mxu0 0.0
    %767 = vmatpush1.msra.mxu0 %v742
    %768 = vmatprep.subr.mxu0 0.0
    %769 = vmatpush1.msra.mxu0 %v743
    %770 = vmatprep.subr.mxu0 0.0
    %771 = vmatpush1.msra.mxu0 %v744
    %772 = vmatprep.subr.mxu0 0.0
    %773 = vmatpush1.msra.mxu0 %v745
    %774 = vmatprep.subr.mxu0 0.0
    %775 = vmatpush1.msra.mxu0 %v746
    %776 = vmatprep.subr.mxu0 0.0
    %777 = vmatpush1.msra.mxu0 %v747
    %778 = vmatprep.subr.mxu0 0.0
    %779 = vmatpush1.msra.mxu0 %v748
    %780 = vmatprep.subr.mxu0 0.0
    %781 = vmatpush1.msra.mxu0 %v749
    %782 = vmatprep.subr.mxu0 0.0
    %783 = vmatpush1.msra.mxu0 0.0
    %784 = vmatprep.subr.mxu0 0.0
    %785 = vmatpush1.msra.mxu0 0.0
    %786 = vmatprep.subr.mxu0 0.0
    %787 = vmatpush1.msra.mxu0 0.0
    %788 = vmatprep.subr.mxu0 0.0
    %789 = vmatpush1.msra.mxu0 0.0
    %790 = vmatprep.subr.mxu0 0.0
    %791 = vmatpush1.msra.mxu0 0.0
    %792 = vmatprep.subr.mxu0 0.0
    %793 = vmatpush1.msra.mxu0 0.0
    %794 = vmatprep.subr.mxu0 0.0
    %795 = vmatpush1.msra.mxu0 0.0
    %796 = vmatprep.subr.mxu0 0.0
    %797 = vmatpush1.msra.mxu0 0.0
    %798 = vmatprep.subr.mxu0 0.0
    %799 = vmatpush1.msra.mxu0 0.0
    %800 = vmatprep.subr.mxu0 0.0
    %801 = vmatpush1.msra.mxu0 0.0
    %802 = vmatprep.subr.mxu0 0.0
    %803 = vmatpush1.msra.mxu0 0.0
    %804 = vmatprep.subr.mxu0 0.0
    %805 = vmatpush1.msra.mxu0 0.0
    %806 = vmatprep.subr.mxu0 0.0
    %807 = vmatpush1.msra.mxu0 0.0
    %808 = vmatprep.subr.mxu0 0.0
    %809 = vmatpush1.msra.mxu0 0.0
    %810 = vmatprep.subr.mxu0 0.0
    %811 = vmatpush1.msra.mxu0 0.0
    %812 = vmatprep.subr.mxu0 0.0
    %813 = vmatpush1.msra.mxu0 0.0
    %814 = vmatprep.mubr.f32.mxu0 0.0
    %815 = vmatmul.mubr.f32.gmra.mrb[0].mxu0 %v634
    %v816 = vpop.f32.mrb[0].mxu0
    %v817 = vadd.f32 0.0, %v816
    %v818 = vpop.f32.mrb[0].mxu0
    %819 = vdwg.mxu0
    %v820 = vadd.f32 %v149, %v817
    %v821 = vtanh.pop %v820
    %822 = vrot.lane.b32.xlu0 %v731, 32
    %v823 = vpop.permute.xlu0 %822
    %v824 = vadd.f32 %v821, %v823
    %v825 = vld [vmem:[%s263] sm:$0xff]
    %v826 = vld [vmem:[%s263 + $0x8] sm:$0xff]
    %v827 = vld [vmem:[%s263 + $0x10] sm:$0xff]
    %v828 = vld [vmem:[%s263 + $0x18] sm:$0xff]
    %v829 = vld [vmem:[%s263 + $0x20] sm:$0xff]
    %v830 = vld [vmem:[%s263 + $0x28] sm:$0xff]
    %v831 = vld [vmem:[%s263 + $0x30] sm:$0xff]
    %v832 = vld [vmem:[%s263 + $0x38] sm:$0xff]
    %v833 = vld [vmem:[%s263 + $0x40] sm:$0xff]
    %v834 = vld [vmem:[%s263 + $0x48] sm:$0xff]
    %v835 = vld [vmem:[%s263 + $0x50] sm:$0xff]
    %v836 = vld [vmem:[%s263 + $0x58] sm:$0xff]
    %v837 = vld [vmem:[%s263 + $0x60] sm:$0xff]
    %v838 = vld [vmem:[%s263 + $0x68] sm:$0xff]
    %v839 = vld [vmem:[%s263 + $0x70] sm:$0xff]
    %v840 = vld [vmem:[%s263 + $0x78] sm:$0xff]
    %v841 = vld [vmem:[%s280] sm:$0x1]
    %v843 = vlaneseq
    %v844 = vshrl.u32 %v843, 7
    %v845 = vsub.s32 0, %v844
    %v846 = vrot.slane %v841, %v845
    %848 = vmatprep.subr.mxu0 0.0
    %849 = vmatpush1.msra.mxu0 %v825
    %850 = vmatprep.subr.mxu0 0.0
    %851 = vmatpush1.msra.mxu0 %v826
    %852 = vmatprep.subr.mxu0 0.0
    %853 = vmatpush1.msra.mxu0 %v827
    %854 = vmatprep.subr.mxu0 0.0
    %855 = vmatpush1.msra.mxu0 %v828
    %856 = vmatprep.subr.mxu0 0.0
    %857 = vmatpush1.msra.mxu0 %v829
    %858 = vmatprep.subr.mxu0 0.0
    %859 = vmatpush1.msra.mxu0 %v830
    %860 = vmatprep.subr.mxu0 0.0
    %861 = vmatpush1.msra.mxu0 %v831
    %862 = vmatprep.subr.mxu0 0.0
    %863 = vmatpush1.msra.mxu0 %v832
    %864 = vmatprep.subr.mxu0 0.0
    %865 = vmatpush1.msra.mxu0 %v833
    %866 = vmatprep.subr.mxu0 0.0
    %867 = vmatpush1.msra.mxu0 %v834
    %868 = vmatprep.subr.mxu0 0.0
    %869 = vmatpush1.msra.mxu0 %v835
    %870 = vmatprep.subr.mxu0 0.0
    %871 = vmatpush1.msra.mxu0 %v836
    %872 = vmatprep.subr.mxu0 0.0
    %873 = vmatpush1.msra.mxu0 %v837
    %874 = vmatprep.subr.mxu0 0.0
    %875 = vmatpush1.msra.mxu0 %v838
    %876 = vmatprep.subr.mxu0 0.0
    %877 = vmatpush1.msra.mxu0 %v839
    %878 = vmatprep.subr.mxu0 0.0
    %879 = vmatpush1.msra.mxu0 %v840
    %880 = vmatprep.subr.mxu0 0.0
    %881 = vmatpush1.msra.mxu0 0.0
    %882 = vmatprep.subr.mxu0 0.0
    %883 = vmatpush1.msra.mxu0 0.0
    %884 = vmatprep.subr.mxu0 0.0
    %885 = vmatpush1.msra.mxu0 0.0
    %886 = vmatprep.subr.mxu0 0.0
    %887 = vmatpush1.msra.mxu0 0.0
    %888 = vmatprep.subr.mxu0 0.0
    %889 = vmatpush1.msra.mxu0 0.0
    %890 = vmatprep.subr.mxu0 0.0
    %891 = vmatpush1.msra.mxu0 0.0
    %892 = vmatprep.subr.mxu0 0.0
    %893 = vmatpush1.msra.mxu0 0.0
    %894 = vmatprep.subr.mxu0 0.0
    %895 = vmatpush1.msra.mxu0 0.0
    %896 = vmatprep.subr.mxu0 0.0
    %897 = vmatpush1.msra.mxu0 0.0
    %898 = vmatprep.subr.mxu0 0.0
    %899 = vmatpush1.msra.mxu0 0.0
    %900 = vmatprep.subr.mxu0 0.0
    %901 = vmatpush1.msra.mxu0 0.0
    %902 = vmatprep.subr.mxu0 0.0
    %903 = vmatpush1.msra.mxu0 0.0
    %904 = vmatprep.subr.mxu0 0.0
    %905 = vmatpush1.msra.mxu0 0.0
    %906 = vmatprep.subr.mxu0 0.0
    %907 = vmatpush1.msra.mxu0 0.0
    %908 = vmatprep.subr.mxu0 0.0
    %909 = vmatpush1.msra.mxu0 0.0
    %910 = vmatprep.subr.mxu0 0.0
    %911 = vmatpush1.msra.mxu0 0.0
    %912 = vmatprep.mubr.f32.mxu0 0.0
    %913 = vmatmul.mubr.f32.gmra.mrb[0].mxu0 %v824
    %v914 = vpop.f32.mrb[0].mxu0
    %v915 = vadd.f32 %v846, %v914
    %v916 = vpop.f32.mrb[0].mxu0
    %917 = vdwg.mxu0
    %v918 = vtanh.pop %v915
    %s919 = scalar_lea.vmem %s5, 24
    %920 = vst [vmem:[%s919] sm:$0xff] %v918
    %v921 = vld [vmem:[%s3] sm:$0xff]
    %v922 = vld [vmem:[%s3 + $0x8] sm:$0xff]
    %v923 = vld [vmem:[%s3 + $0x10] sm:$0xff]
    %v924 = vld [vmem:[%s3 + $0x18] sm:$0xff]
    %v925 = vld [vmem:[%s3 + $0x20] sm:$0xff]
    %v926 = vld [vmem:[%s3 + $0x28] sm:$0xff]
    %v927 = vld [vmem:[%s3 + $0x30] sm:$0xff]
    %v928 = vld [vmem:[%s3 + $0x38] sm:$0xff]
    %v929 = vld [vmem:[%s3 + $0x40] sm:$0xff]
    %v930 = vld [vmem:[%s3 + $0x48] sm:$0xff]
    %v931 = vld [vmem:[%s3 + $0x50] sm:$0xff]
    %v932 = vld [vmem:[%s3 + $0x58] sm:$0xff]
    %v933 = vld [vmem:[%s3 + $0x60] sm:$0xff]
    %v934 = vld [vmem:[%s3 + $0x68] sm:$0xff]
    %v935 = vld [vmem:[%s3 + $0x70] sm:$0xff]
    %v936 = vld [vmem:[%s3 + $0x78] sm:$0xff]
    %937 = vmatprep.subr.mxu0 0.0
    %938 = vmatpush1.msra.mxu0 %v921
    %939 = vmatprep.subr.mxu0 0.0
    %940 = vmatpush1.msra.mxu0 %v922
    %941 = vmatprep.subr.mxu0 0.0
    %942 = vmatpush1.msra.mxu0 %v923
    %943 = vmatprep.subr.mxu0 0.0
    %944 = vmatpush1.msra.mxu0 %v924
    %945 = vmatprep.subr.mxu0 0.0
    %946 = vmatpush1.msra.mxu0 %v925
    %947 = vmatprep.subr.mxu0 0.0
    %948 = vmatpush1.msra.mxu0 %v926
    %949 = vmatprep.subr.mxu0 0.0
    %950 = vmatpush1.msra.mxu0 %v927
    %951 = vmatprep.subr.mxu0 0.0
    %952 = vmatpush1.msra.mxu0 %v928
    %953 = vmatprep.subr.mxu0 0.0
    %954 = vmatpush1.msra.mxu0 %v929
    %955 = vmatprep.subr.mxu0 0.0
    %956 = vmatpush1.msra.mxu0 %v930
    %957 = vmatprep.subr.mxu0 0.0
    %958 = vmatpush1.msra.mxu0 %v931
    %959 = vmatprep.subr.mxu0 0.0
    %960 = vmatpush1.msra.mxu0 %v932
    %961 = vmatprep.subr.mxu0 0.0
    %962 = vmatpush1.msra.mxu0 %v933
    %963 = vmatprep.subr.mxu0 0.0
    %964 = vmatpush1.msra.mxu0 %v934
    %965 = vmatprep.subr.mxu0 0.0
    %966 = vmatpush1.msra.mxu0 %v935
    %967 = vmatprep.subr.mxu0 0.0
    %968 = vmatpush1.msra.mxu0 %v936
    %969 = vmatprep.subr.mxu0 0.0
    %970 = vmatpush1.msra.mxu0 0.0
    %971 = vmatprep.subr.mxu0 0.0
    %972 = vmatpush1.msra.mxu0 0.0
    %973 = vmatprep.subr.mxu0 0.0
    %974 = vmatpush1.msra.mxu0 0.0
    %975 = vmatprep.subr.mxu0 0.0
    %976 = vmatpush1.msra.mxu0 0.0
    %977 = vmatprep.subr.mxu0 0.0
    %978 = vmatpush1.msra.mxu0 0.0
    %979 = vmatprep.subr.mxu0 0.0
    %980 = vmatpush1.msra.mxu0 0.0
    %981 = vmatprep.subr.mxu0 0.0
    %982 = vmatpush1.msra.mxu0 0.0
    %983 = vmatprep.subr.mxu0 0.0
    %984 = vmatpush1.msra.mxu0 0.0
    %985 = vmatprep.subr.mxu0 0.0
    %986 = vmatpush1.msra.mxu0 0.0
    %987 = vmatprep.subr.mxu0 0.0
    %988 = vmatpush1.msra.mxu0 0.0
    %989 = vmatprep.subr.mxu0 0.0
    %990 = vmatpush1.msra.mxu0 0.0
    %991 = vmatprep.subr.mxu0 0.0
    %992 = vmatpush1.msra.mxu0 0.0
    %993 = vmatprep.subr.mxu0 0.0
    %994 = vmatpush1.msra.mxu0 0.0
    %995 = vmatprep.subr.mxu0 0.0
    %996 = vmatpush1.msra.mxu0 0.0
    %997 = vmatprep.subr.mxu0 0.0
    %998 = vmatpush1.msra.mxu0 0.0
    %999 = vmatprep.subr.mxu0 0.0
    %1000 = vmatpush1.msra.mxu0 0.0
    %1001 = vmatprep.mubr.f32.mxu0 0.0
    %1002 = vmatmul.mubr.f32.gmra.mrb[0].mxu0 %v821
    %v1003 = vpop.f32.mrb[0].mxu0
    %v1004 = vadd.f32 0.0, %v1003
    %v1005 = vpop.f32.mrb[0].mxu0
    %1006 = vdwg.mxu0
    %v1007 = vadd.f32 %v154, %v1004
    %v1008 = vtanh.pop %v1007
    %1009 = vrot.lane.b32.xlu0 %v918, 32
    %v1010 = vpop.permute.xlu0 %1009
    %v1011 = vadd.f32 %v1008, %v1010
    %v1012 = vld [vmem:[%s263] sm:$0xff]
    %v1013 = vld [vmem:[%s263 + $0x8] sm:$0xff]
    %v1014 = vld [vmem:[%s263 + $0x10] sm:$0xff]
    %v1015 = vld [vmem:[%s263 + $0x18] sm:$0xff]
    %v1016 = vld [vmem:[%s263 + $0x20] sm:$0xff]
    %v1017 = vld [vmem:[%s263 + $0x28] sm:$0xff]
    %v1018 = vld [vmem:[%s263 + $0x30] sm:$0xff]
    %v1019 = vld [vmem:[%s263 + $0x38] sm:$0xff]
    %v1020 = vld [vmem:[%s263 + $0x40] sm:$0xff]
    %v1021 = vld [vmem:[%s263 + $0x48] sm:$0xff]
    %v1022 = vld [vmem:[%s263 + $0x50] sm:$0xff]
    %v1023 = vld [vmem:[%s263 + $0x58] sm:$0xff]
    %v1024 = vld [vmem:[%s263 + $0x60] sm:$0xff]
    %v1025 = vld [vmem:[%s263 + $0x68] sm:$0xff]
    %v1026 = vld [vmem:[%s263 + $0x70] sm:$0xff]
    %v1027 = vld [vmem:[%s263 + $0x78] sm:$0xff]
    %v1028 = vld [vmem:[%s280] sm:$0x1]
    %v1030 = vlaneseq
    %v1031 = vshrl.u32 %v1030, 7
    %v1032 = vsub.s32 0, %v1031
    %v1033 = vrot.slane %v1028, %v1032
    %1035 = vmatprep.subr.mxu0 0.0
    %1036 = vmatpush1.msra.mxu0 %v1012
    %1037 = vmatprep.subr.mxu0 0.0
    %1038 = vmatpush1.msra.mxu0 %v1013
    %1039 = vmatprep.subr.mxu0 0.0
    %1040 = vmatpush1.msra.mxu0 %v1014
    %1041 = vmatprep.subr.mxu0 0.0
    %1042 = vmatpush1.msra.mxu0 %v1015
    %1043 = vmatprep.subr.mxu0 0.0
    %1044 = vmatpush1.msra.mxu0 %v1016
    %1045 = vmatprep.subr.mxu0 0.0
    %1046 = vmatpush1.msra.mxu0 %v1017
    %1047 = vmatprep.subr.mxu0 0.0
    %1048 = vmatpush1.msra.mxu0 %v1018
    %1049 = vmatprep.subr.mxu0 0.0
    %1050 = vmatpush1.msra.mxu0 %v1019
    %1051 = vmatprep.subr.mxu0 0.0
    %1052 = vmatpush1.msra.mxu0 %v1020
    %1053 = vmatprep.subr.mxu0 0.0
    %1054 = vmatpush1.msra.mxu0 %v1021
    %1055 = vmatprep.subr.mxu0 0.0
    %1056 = vmatpush1.msra.mxu0 %v1022
    %1057 = vmatprep.subr.mxu0 0.0
    %1058 = vmatpush1.msra.mxu0 %v1023
    %1059 = vmatprep.subr.mxu0 0.0
    %1060 = vmatpush1.msra.mxu0 %v1024
    %1061 = vmatprep.subr.mxu0 0.0
    %1062 = vmatpush1.msra.mxu0 %v1025
    %1063 = vmatprep.subr.mxu0 0.0
    %1064 = vmatpush1.msra.mxu0 %v1026
    %1065 = vmatprep.subr.mxu0 0.0
    %1066 = vmatpush1.msra.mxu0 %v1027
    %1067 = vmatprep.subr.mxu0 0.0
    %1068 = vmatpush1.msra.mxu0 0.0
    %1069 = vmatprep.subr.mxu0 0.0
    %1070 = vmatpush1.msra.mxu0 0.0
    %1071 = vmatprep.subr.mxu0 0.0
    %1072 = vmatpush1.msra.mxu0 0.0
    %1073 = vmatprep.subr.mxu0 0.0
    %1074 = vmatpush1.msra.mxu0 0.0
    %1075 = vmatprep.subr.mxu0 0.0
    %1076 = vmatpush1.msra.mxu0 0.0
    %1077 = vmatprep.subr.mxu0 0.0
    %1078 = vmatpush1.msra.mxu0 0.0
    %1079 = vmatprep.subr.mxu0 0.0
    %1080 = vmatpush1.msra.mxu0 0.0
    %1081 = vmatprep.subr.mxu0 0.0
    %1082 = vmatpush1.msra.mxu0 0.0
    %1083 = vmatprep.subr.mxu0 0.0
    %1084 = vmatpush1.msra.mxu0 0.0
    %1085 = vmatprep.subr.mxu0 0.0
    %1086 = vmatpush1.msra.mxu0 0.0
    %1087 = vmatprep.subr.mxu0 0.0
    %1088 = vmatpush1.msra.mxu0 0.0
    %1089 = vmatprep.subr.mxu0 0.0
    %1090 = vmatpush1.msra.mxu0 0.0
    %1091 = vmatprep.subr.mxu0 0.0
    %1092 = vmatpush1.msra.mxu0 0.0
    %1093 = vmatprep.subr.mxu0 0.0
    %1094 = vmatpush1.msra.mxu0 0.0
    %1095 = vmatprep.subr.mxu0 0.0
    %1096 = vmatpush1.msra.mxu0 0.0
    %1097 = vmatprep.subr.mxu0 0.0
    %1098 = vmatpush1.msra.mxu0 0.0
    %1099 = vmatprep.mubr.f32.mxu0 0.0
    %1100 = vmatmul.mubr.f32.gmra.mrb[0].mxu0 %v1011
    %v1101 = vpop.f32.mrb[0].mxu0
    %v1102 = vadd.f32 %v1033, %v1101
    %v1103 = vpop.f32.mrb[0].mxu0
    %1104 = vdwg.mxu0
    %v1105 = vtanh.pop %v1102
    %s1106 = scalar_lea.vmem %s5, 32
    %1107 = vst [vmem:[%s1106] sm:$0xff] %v1105
    %v1108 = vld [vmem:[%s3] sm:$0xff]
    %v1109 = vld [vmem:[%s3 + $0x8] sm:$0xff]
    %v1110 = vld [vmem:[%s3 + $0x10] sm:$0xff]
    %v1111 = vld [vmem:[%s3 + $0x18] sm:$0xff]
    %v1112 = vld [vmem:[%s3 + $0x20] sm:$0xff]
    %v1113 = vld [vmem:[%s3 + $0x28] sm:$0xff]
    %v1114 = vld [vmem:[%s3 + $0x30] sm:$0xff]
    %v1115 = vld [vmem:[%s3 + $0x38] sm:$0xff]
    %v1116 = vld [vmem:[%s3 + $0x40] sm:$0xff]
    %v1117 = vld [vmem:[%s3 + $0x48] sm:$0xff]
    %v1118 = vld [vmem:[%s3 + $0x50] sm:$0xff]
    %v1119 = vld [vmem:[%s3 + $0x58] sm:$0xff]
    %v1120 = vld [vmem:[%s3 + $0x60] sm:$0xff]
    %v1121 = vld [vmem:[%s3 + $0x68] sm:$0xff]
    %v1122 = vld [vmem:[%s3 + $0x70] sm:$0xff]
    %v1123 = vld [vmem:[%s3 + $0x78] sm:$0xff]
    %1124 = vmatprep.subr.mxu0 0.0
    %1125 = vmatpush1.msra.mxu0 %v1108
    %1126 = vmatprep.subr.mxu0 0.0
    %1127 = vmatpush1.msra.mxu0 %v1109
    %1128 = vmatprep.subr.mxu0 0.0
    %1129 = vmatpush1.msra.mxu0 %v1110
    %1130 = vmatprep.subr.mxu0 0.0
    %1131 = vmatpush1.msra.mxu0 %v1111
    %1132 = vmatprep.subr.mxu0 0.0
    %1133 = vmatpush1.msra.mxu0 %v1112
    %1134 = vmatprep.subr.mxu0 0.0
    %1135 = vmatpush1.msra.mxu0 %v1113
    %1136 = vmatprep.subr.mxu0 0.0
    %1137 = vmatpush1.msra.mxu0 %v1114
    %1138 = vmatprep.subr.mxu0 0.0
    %1139 = vmatpush1.msra.mxu0 %v1115
    %1140 = vmatprep.subr.mxu0 0.0
    %1141 = vmatpush1.msra.mxu0 %v1116
    %1142 = vmatprep.subr.mxu0 0.0
    %1143 = vmatpush1.msra.mxu0 %v1117
    %1144 = vmatprep.subr.mxu0 0.0
    %1145 = vmatpush1.msra.mxu0 %v1118
    %1146 = vmatprep.subr.mxu0 0.0
    %1147 = vmatpush1.msra.mxu0 %v1119
    %1148 = vmatprep.subr.mxu0 0.0
    %1149 = vmatpush1.msra.mxu0 %v1120
    %1150 = vmatprep.subr.mxu0 0.0
    %1151 = vmatpush1.msra.mxu0 %v1121
    %1152 = vmatprep.subr.mxu0 0.0
    %1153 = vmatpush1.msra.mxu0 %v1122
    %1154 = vmatprep.subr.mxu0 0.0
    %1155 = vmatpush1.msra.mxu0 %v1123
    %1156 = vmatprep.subr.mxu0 0.0
    %1157 = vmatpush1.msra.mxu0 0.0
    %1158 = vmatprep.subr.mxu0 0.0
    %1159 = vmatpush1.msra.mxu0 0.0
    %1160 = vmatprep.subr.mxu0 0.0
    %1161 = vmatpush1.msra.mxu0 0.0
    %1162 = vmatprep.subr.mxu0 0.0
    %1163 = vmatpush1.msra.mxu0 0.0
    %1164 = vmatprep.subr.mxu0 0.0
    %1165 = vmatpush1.msra.mxu0 0.0
    %1166 = vmatprep.subr.mxu0 0.0
    %1167 = vmatpush1.msra.mxu0 0.0
    %1168 = vmatprep.subr.mxu0 0.0
    %1169 = vmatpush1.msra.mxu0 0.0
    %1170 = vmatprep.subr.mxu0 0.0
    %1171 = vmatpush1.msra.mxu0 0.0
    %1172 = vmatprep.subr.mxu0 0.0
    %1173 = vmatpush1.msra.mxu0 0.0
    %1174 = vmatprep.subr.mxu0 0.0
    %1175 = vmatpush1.msra.mxu0 0.0
    %1176 = vmatprep.subr.mxu0 0.0
    %1177 = vmatpush1.msra.mxu0 0.0
    %1178 = vmatprep.subr.mxu0 0.0
    %1179 = vmatpush1.msra.mxu0 0.0
    %1180 = vmatprep.subr.mxu0 0.0
    %1181 = vmatpush1.msra.mxu0 0.0
    %1182 = vmatprep.subr.mxu0 0.0
    %1183 = vmatpush1.msra.mxu0 0.0
    %1184 = vmatprep.subr.mxu0 0.0
    %1185 = vmatpush1.msra.mxu0 0.0
    %1186 = vmatprep.subr.mxu0 0.0
    %1187 = vmatpush1.msra.mxu0 0.0
    %1188 = vmatprep.mubr.f32.mxu0 0.0
    %1189 = vmatmul.mubr.f32.gmra.mrb[0].mxu0 %v1008
    %v1190 = vpop.f32.mrb[0].mxu0
    %v1191 = vadd.f32 0.0, %v1190
    %v1192 = vpop.f32.mrb[0].mxu0
    %1193 = vdwg.mxu0
    %v1194 = vadd.f32 %v159, %v1191
    %v1195 = vtanh.pop %v1194
    %1196 = vrot.lane.b32.xlu0 %v1105, 32
    %v1197 = vpop.permute.xlu0 %1196
    %v1198 = vadd.f32 %v1195, %v1197
    %v1199 = vld [vmem:[%s263] sm:$0xff]
    %v1200 = vld [vmem:[%s263 + $0x8] sm:$0xff]
    %v1201 = vld [vmem:[%s263 + $0x10] sm:$0xff]
    %v1202 = vld [vmem:[%s263 + $0x18] sm:$0xff]
    %v1203 = vld [vmem:[%s263 + $0x20] sm:$0xff]
    %v1204 = vld [vmem:[%s263 + $0x28] sm:$0xff]
    %v1205 = vld [vmem:[%s263 + $0x30] sm:$0xff]
    %v1206 = vld [vmem:[%s263 + $0x38] sm:$0xff]
    %v1207 = vld [vmem:[%s263 + $0x40] sm:$0xff]
    %v1208 = vld [vmem:[%s263 + $0x48] sm:$0xff]
    %v1209 = vld [vmem:[%s263 + $0x50] sm:$0xff]
    %v1210 = vld [vmem:[%s263 + $0x58] sm:$0xff]
    %v1211 = vld [vmem:[%s263 + $0x60] sm:$0xff]
    %v1212 = vld [vmem:[%s263 + $0x68] sm:$0xff]
    %v1213 = vld [vmem:[%s263 + $0x70] sm:$0xff]
    %v1214 = vld [vmem:[%s263 + $0x78] sm:$0xff]
    %v1215 = vld [vmem:[%s280] sm:$0x1]
    %v1217 = vlaneseq
    %v1218 = vshrl.u32 %v1217, 7
    %v1219 = vsub.s32 0, %v1218
    %v1220 = vrot.slane %v1215, %v1219
    %1222 = vmatprep.subr.mxu0 0.0
    %1223 = vmatpush1.msra.mxu0 %v1199
    %1224 = vmatprep.subr.mxu0 0.0
    %1225 = vmatpush1.msra.mxu0 %v1200
    %1226 = vmatprep.subr.mxu0 0.0
    %1227 = vmatpush1.msra.mxu0 %v1201
    %1228 = vmatprep.subr.mxu0 0.0
    %1229 = vmatpush1.msra.mxu0 %v1202
    %1230 = vmatprep.subr.mxu0 0.0
    %1231 = vmatpush1.msra.mxu0 %v1203
    %1232 = vmatprep.subr.mxu0 0.0
    %1233 = vmatpush1.msra.mxu0 %v1204
    %1234 = vmatprep.subr.mxu0 0.0
    %1235 = vmatpush1.msra.mxu0 %v1205
    %1236 = vmatprep.subr.mxu0 0.0
    %1237 = vmatpush1.msra.mxu0 %v1206
    %1238 = vmatprep.subr.mxu0 0.0
    %1239 = vmatpush1.msra.mxu0 %v1207
    %1240 = vmatprep.subr.mxu0 0.0
    %1241 = vmatpush1.msra.mxu0 %v1208
    %1242 = vmatprep.subr.mxu0 0.0
    %1243 = vmatpush1.msra.mxu0 %v1209
    %1244 = vmatprep.subr.mxu0 0.0
    %1245 = vmatpush1.msra.mxu0 %v1210
    %1246 = vmatprep.subr.mxu0 0.0
    %1247 = vmatpush1.msra.mxu0 %v1211
    %1248 = vmatprep.subr.mxu0 0.0
    %1249 = vmatpush1.msra.mxu0 %v1212
    %1250 = vmatprep.subr.mxu0 0.0
    %1251 = vmatpush1.msra.mxu0 %v1213
    %1252 = vmatprep.subr.mxu0 0.0
    %1253 = vmatpush1.msra.mxu0 %v1214
    %1254 = vmatprep.subr.mxu0 0.0
    %1255 = vmatpush1.msra.mxu0 0.0
    %1256 = vmatprep.subr.mxu0 0.0
    %1257 = vmatpush1.msra.mxu0 0.0
    %1258 = vmatprep.subr.mxu0 0.0
    %1259 = vmatpush1.msra.mxu0 0.0
    %1260 = vmatprep.subr.mxu0 0.0
    %1261 = vmatpush1.msra.mxu0 0.0
    %1262 = vmatprep.subr.mxu0 0.0
    %1263 = vmatpush1.msra.mxu0 0.0
    %1264 = vmatprep.subr.mxu0 0.0
    %1265 = vmatpush1.msra.mxu0 0.0
    %1266 = vmatprep.subr.mxu0 0.0
    %1267 = vmatpush1.msra.mxu0 0.0
    %1268 = vmatprep.subr.mxu0 0.0
    %1269 = vmatpush1.msra.mxu0 0.0
    %1270 = vmatprep.subr.mxu0 0.0
    %1271 = vmatpush1.msra.mxu0 0.0
    %1272 = vmatprep.subr.mxu0 0.0
    %1273 = vmatpush1.msra.mxu0 0.0
    %1274 = vmatprep.subr.mxu0 0.0
    %1275 = vmatpush1.msra.mxu0 0.0
    %1276 = vmatprep.subr.mxu0 0.0
    %1277 = vmatpush1.msra.mxu0 0.0
    %1278 = vmatprep.subr.mxu0 0.0
    %1279 = vmatpush1.msra.mxu0 0.0
    %1280 = vmatprep.subr.mxu0 0.0
    %1281 = vmatpush1.msra.mxu0 0.0
    %1282 = vmatprep.subr.mxu0 0.0
    %1283 = vmatpush1.msra.mxu0 0.0
    %1284 = vmatprep.subr.mxu0 0.0
    %1285 = vmatpush1.msra.mxu0 0.0
    %1286 = vmatprep.mubr.f32.mxu0 0.0
    %1287 = vmatmul.mubr.f32.gmra.mrb[0].mxu0 %v1198
    %v1288 = vpop.f32.mrb[0].mxu0
    %v1289 = vadd.f32 %v1220, %v1288
    %v1290 = vpop.f32.mrb[0].mxu0
    %1291 = vdwg.mxu0
    %v1292 = vtanh.pop %v1289
    %s1293 = scalar_lea.vmem %s5, 40
    %1294 = vst [vmem:[%s1293] sm:$0xff] %v1292
    %v1295 = vld [vmem:[%s3] sm:$0xff]
    %v1296 = vld [vmem:[%s3 + $0x8] sm:$0xff]
    %v1297 = vld [vmem:[%s3 + $0x10] sm:$0xff]
    %v1298 = vld [vmem:[%s3 + $0x18] sm:$0xff]
    %v1299 = vld [vmem:[%s3 + $0x20] sm:$0xff]
    %v1300 = vld [vmem:[%s3 + $0x28] sm:$0xff]
    %v1301 = vld [vmem:[%s3 + $0x30] sm:$0xff]
    %v1302 = vld [vmem:[%s3 + $0x38] sm:$0xff]
    %v1303 = vld [vmem:[%s3 + $0x40] sm:$0xff]
    %v1304 = vld [vmem:[%s3 + $0x48] sm:$0xff]
    %v1305 = vld [vmem:[%s3 + $0x50] sm:$0xff]
    %v1306 = vld [vmem:[%s3 + $0x58] sm:$0xff]
    %v1307 = vld [vmem:[%s3 + $0x60] sm:$0xff]
    %v1308 = vld [vmem:[%s3 + $0x68] sm:$0xff]
    %v1309 = vld [vmem:[%s3 + $0x70] sm:$0xff]
    %v1310 = vld [vmem:[%s3 + $0x78] sm:$0xff]
    %1311 = vmatprep.subr.mxu0 0.0
    %1312 = vmatpush1.msra.mxu0 %v1295
    %1313 = vmatprep.subr.mxu0 0.0
    %1314 = vmatpush1.msra.mxu0 %v1296
    %1315 = vmatprep.subr.mxu0 0.0
    %1316 = vmatpush1.msra.mxu0 %v1297
    %1317 = vmatprep.subr.mxu0 0.0
    %1318 = vmatpush1.msra.mxu0 %v1298
    %1319 = vmatprep.subr.mxu0 0.0
    %1320 = vmatpush1.msra.mxu0 %v1299
    %1321 = vmatprep.subr.mxu0 0.0
    %1322 = vmatpush1.msra.mxu0 %v1300
    %1323 = vmatprep.subr.mxu0 0.0
    %1324 = vmatpush1.msra.mxu0 %v1301
    %1325 = vmatprep.subr.mxu0 0.0
    %1326 = vmatpush1.msra.mxu0 %v1302
    %1327 = vmatprep.subr.mxu0 0.0
    %1328 = vmatpush1.msra.mxu0 %v1303
    %1329 = vmatprep.subr.mxu0 0.0
    %1330 = vmatpush1.msra.mxu0 %v1304
    %1331 = vmatprep.subr.mxu0 0.0
    %1332 = vmatpush1.msra.mxu0 %v1305
    %1333 = vmatprep.subr.mxu0 0.0
    %1334 = vmatpush1.msra.mxu0 %v1306
    %1335 = vmatprep.subr.mxu0 0.0
    %1336 = vmatpush1.msra.mxu0 %v1307
    %1337 = vmatprep.subr.mxu0 0.0
    %1338 = vmatpush1.msra.mxu0 %v1308
    %1339 = vmatprep.subr.mxu0 0.0
    %1340 = vmatpush1.msra.mxu0 %v1309
    %1341 = vmatprep.subr.mxu0 0.0
    %1342 = vmatpush1.msra.mxu0 %v1310
    %1343 = vmatprep.subr.mxu0 0.0
    %1344 = vmatpush1.msra.mxu0 0.0
    %1345 = vmatprep.subr.mxu0 0.0
    %1346 = vmatpush1.msra.mxu0 0.0
    %1347 = vmatprep.subr.mxu0 0.0
    %1348 = vmatpush1.msra.mxu0 0.0
    %1349 = vmatprep.subr.mxu0 0.0
    %1350 = vmatpush1.msra.mxu0 0.0
    %1351 = vmatprep.subr.mxu0 0.0
    %1352 = vmatpush1.msra.mxu0 0.0
    %1353 = vmatprep.subr.mxu0 0.0
    %1354 = vmatpush1.msra.mxu0 0.0
    %1355 = vmatprep.subr.mxu0 0.0
    %1356 = vmatpush1.msra.mxu0 0.0
    %1357 = vmatprep.subr.mxu0 0.0
    %1358 = vmatpush1.msra.mxu0 0.0
    %1359 = vmatprep.subr.mxu0 0.0
    %1360 = vmatpush1.msra.mxu0 0.0
    %1361 = vmatprep.subr.mxu0 0.0
    %1362 = vmatpush1.msra.mxu0 0.0
    %1363 = vmatprep.subr.mxu0 0.0
    %1364 = vmatpush1.msra.mxu0 0.0
    %1365 = vmatprep.subr.mxu0 0.0
    %1366 = vmatpush1.msra.mxu0 0.0
    %1367 = vmatprep.subr.mxu0 0.0
    %1368 = vmatpush1.msra.mxu0 0.0
    %1369 = vmatprep.subr.mxu0 0.0
    %1370 = vmatpush1.msra.mxu0 0.0
    %1371 = vmatprep.subr.mxu0 0.0
    %1372 = vmatpush1.msra.mxu0 0.0
    %1373 = vmatprep.subr.mxu0 0.0
    %1374 = vmatpush1.msra.mxu0 0.0
    %1375 = vmatprep.mubr.f32.mxu0 0.0
    %1376 = vmatmul.mubr.f32.gmra.mrb[0].mxu0 %v1195
    %v1377 = vpop.f32.mrb[0].mxu0
    %v1378 = vadd.f32 0.0, %v1377
    %v1379 = vpop.f32.mrb[0].mxu0
    %1380 = vdwg.mxu0
    %v1381 = vadd.f32 %v164, %v1378
    %v1382 = vtanh.pop %v1381
    %1383 = vrot.lane.b32.xlu0 %v1292, 32
    %v1384 = vpop.permute.xlu0 %1383
    %v1385 = vadd.f32 %v1382, %v1384
    %v1386 = vld [vmem:[%s263] sm:$0xff]
    %v1387 = vld [vmem:[%s263 + $0x8] sm:$0xff]
    %v1388 = vld [vmem:[%s263 + $0x10] sm:$0xff]
    %v1389 = vld [vmem:[%s263 + $0x18] sm:$0xff]
    %v1390 = vld [vmem:[%s263 + $0x20] sm:$0xff]
    %v1391 = vld [vmem:[%s263 + $0x28] sm:$0xff]
    %v1392 = vld [vmem:[%s263 + $0x30] sm:$0xff]
    %v1393 = vld [vmem:[%s263 + $0x38] sm:$0xff]
    %v1394 = vld [vmem:[%s263 + $0x40] sm:$0xff]
    %v1395 = vld [vmem:[%s263 + $0x48] sm:$0xff]
    %v1396 = vld [vmem:[%s263 + $0x50] sm:$0xff]
    %v1397 = vld [vmem:[%s263 + $0x58] sm:$0xff]
    %v1398 = vld [vmem:[%s263 + $0x60] sm:$0xff]
    %v1399 = vld [vmem:[%s263 + $0x68] sm:$0xff]
    %v1400 = vld [vmem:[%s263 + $0x70] sm:$0xff]
    %v1401 = vld [vmem:[%s263 + $0x78] sm:$0xff]
    %v1402 = vld [vmem:[%s280] sm:$0x1]
    %v1404 = vlaneseq
    %v1405 = vshrl.u32 %v1404, 7
    %v1406 = vsub.s32 0, %v1405
    %v1407 = vrot.slane %v1402, %v1406
    %1409 = vmatprep.subr.mxu0 0.0
    %1410 = vmatpush1.msra.mxu0 %v1386
    %1411 = vmatprep.subr.mxu0 0.0
    %1412 = vmatpush1.msra.mxu0 %v1387
    %1413 = vmatprep.subr.mxu0 0.0
    %1414 = vmatpush1.msra.mxu0 %v1388
    %1415 = vmatprep.subr.mxu0 0.0
    %1416 = vmatpush1.msra.mxu0 %v1389
    %1417 = vmatprep.subr.mxu0 0.0
    %1418 = vmatpush1.msra.mxu0 %v1390
    %1419 = vmatprep.subr.mxu0 0.0
    %1420 = vmatpush1.msra.mxu0 %v1391
    %1421 = vmatprep.subr.mxu0 0.0
    %1422 = vmatpush1.msra.mxu0 %v1392
    %1423 = vmatprep.subr.mxu0 0.0
    %1424 = vmatpush1.msra.mxu0 %v1393
    %1425 = vmatprep.subr.mxu0 0.0
    %1426 = vmatpush1.msra.mxu0 %v1394
    %1427 = vmatprep.subr.mxu0 0.0
    %1428 = vmatpush1.msra.mxu0 %v1395
    %1429 = vmatprep.subr.mxu0 0.0
    %1430 = vmatpush1.msra.mxu0 %v1396
    %1431 = vmatprep.subr.mxu0 0.0
    %1432 = vmatpush1.msra.mxu0 %v1397
    %1433 = vmatprep.subr.mxu0 0.0
    %1434 = vmatpush1.msra.mxu0 %v1398
    %1435 = vmatprep.subr.mxu0 0.0
    %1436 = vmatpush1.msra.mxu0 %v1399
    %1437 = vmatprep.subr.mxu0 0.0
    %1438 = vmatpush1.msra.mxu0 %v1400
    %1439 = vmatprep.subr.mxu0 0.0
    %1440 = vmatpush1.msra.mxu0 %v1401
    %1441 = vmatprep.subr.mxu0 0.0
    %1442 = vmatpush1.msra.mxu0 0.0
    %1443 = vmatprep.subr.mxu0 0.0
    %1444 = vmatpush1.msra.mxu0 0.0
    %1445 = vmatprep.subr.mxu0 0.0
    %1446 = vmatpush1.msra.mxu0 0.0
    %1447 = vmatprep.subr.mxu0 0.0
    %1448 = vmatpush1.msra.mxu0 0.0
    %1449 = vmatprep.subr.mxu0 0.0
    %1450 = vmatpush1.msra.mxu0 0.0
    %1451 = vmatprep.subr.mxu0 0.0
    %1452 = vmatpush1.msra.mxu0 0.0
    %1453 = vmatprep.subr.mxu0 0.0
    %1454 = vmatpush1.msra.mxu0 0.0
    %1455 = vmatprep.subr.mxu0 0.0
    %1456 = vmatpush1.msra.mxu0 0.0
    %1457 = vmatprep.subr.mxu0 0.0
    %1458 = vmatpush1.msra.mxu0 0.0
    %1459 = vmatprep.subr.mxu0 0.0
    %1460 = vmatpush1.msra.mxu0 0.0
    %1461 = vmatprep.subr.mxu0 0.0
    %1462 = vmatpush1.msra.mxu0 0.0
    %1463 = vmatprep.subr.mxu0 0.0
    %1464 = vmatpush1.msra.mxu0 0.0
    %1465 = vmatprep.subr.mxu0 0.0
    %1466 = vmatpush1.msra.mxu0 0.0
    %1467 = vmatprep.subr.mxu0 0.0
    %1468 = vmatpush1.msra.mxu0 0.0
    %1469 = vmatprep.subr.mxu0 0.0
    %1470 = vmatpush1.msra.mxu0 0.0
    %1471 = vmatprep.subr.mxu0 0.0
    %1472 = vmatpush1.msra.mxu0 0.0
    %1473 = vmatprep.mubr.f32.mxu0 0.0
    %1474 = vmatmul.mubr.f32.gmra.mrb[0].mxu0 %v1385
    %v1475 = vpop.f32.mrb[0].mxu0
    %v1476 = vadd.f32 %v1407, %v1475
    %v1477 = vpop.f32.mrb[0].mxu0
    %1478 = vdwg.mxu0
    %v1479 = vtanh.pop %v1476
    %s1480 = scalar_lea.vmem %s5, 48
    %1481 = vst [vmem:[%s1480] sm:$0xff] %v1479
    %v1482 = vld [vmem:[%s3] sm:$0xff]
    %v1483 = vld [vmem:[%s3 + $0x8] sm:$0xff]
    %v1484 = vld [vmem:[%s3 + $0x10] sm:$0xff]
    %v1485 = vld [vmem:[%s3 + $0x18] sm:$0xff]
    %v1486 = vld [vmem:[%s3 + $0x20] sm:$0xff]
    %v1487 = vld [vmem:[%s3 + $0x28] sm:$0xff]
    %v1488 = vld [vmem:[%s3 + $0x30] sm:$0xff]
    %v1489 = vld [vmem:[%s3 + $0x38] sm:$0xff]
    %v1490 = vld [vmem:[%s3 + $0x40] sm:$0xff]
    %v1491 = vld [vmem:[%s3 + $0x48] sm:$0xff]
    %v1492 = vld [vmem:[%s3 + $0x50] sm:$0xff]
    %v1493 = vld [vmem:[%s3 + $0x58] sm:$0xff]
    %v1494 = vld [vmem:[%s3 + $0x60] sm:$0xff]
    %v1495 = vld [vmem:[%s3 + $0x68] sm:$0xff]
    %v1496 = vld [vmem:[%s3 + $0x70] sm:$0xff]
    %v1497 = vld [vmem:[%s3 + $0x78] sm:$0xff]
    %1498 = vmatprep.subr.mxu0 0.0
    %1499 = vmatpush1.msra.mxu0 %v1482
    %1500 = vmatprep.subr.mxu0 0.0
    %1501 = vmatpush1.msra.mxu0 %v1483
    %1502 = vmatprep.subr.mxu0 0.0
    %1503 = vmatpush1.msra.mxu0 %v1484
    %1504 = vmatprep.subr.mxu0 0.0
    %1505 = vmatpush1.msra.mxu0 %v1485
    %1506 = vmatprep.subr.mxu0 0.0
    %1507 = vmatpush1.msra.mxu0 %v1486
    %1508 = vmatprep.subr.mxu0 0.0
    %1509 = vmatpush1.msra.mxu0 %v1487
    %1510 = vmatprep.subr.mxu0 0.0
    %1511 = vmatpush1.msra.mxu0 %v1488
    %1512 = vmatprep.subr.mxu0 0.0
    %1513 = vmatpush1.msra.mxu0 %v1489
    %1514 = vmatprep.subr.mxu0 0.0
    %1515 = vmatpush1.msra.mxu0 %v1490
    %1516 = vmatprep.subr.mxu0 0.0
    %1517 = vmatpush1.msra.mxu0 %v1491
    %1518 = vmatprep.subr.mxu0 0.0
    %1519 = vmatpush1.msra.mxu0 %v1492
    %1520 = vmatprep.subr.mxu0 0.0
    %1521 = vmatpush1.msra.mxu0 %v1493
    %1522 = vmatprep.subr.mxu0 0.0
    %1523 = vmatpush1.msra.mxu0 %v1494
    %1524 = vmatprep.subr.mxu0 0.0
    %1525 = vmatpush1.msra.mxu0 %v1495
    %1526 = vmatprep.subr.mxu0 0.0
    %1527 = vmatpush1.msra.mxu0 %v1496
    %1528 = vmatprep.subr.mxu0 0.0
    %1529 = vmatpush1.msra.mxu0 %v1497
    %1530 = vmatprep.subr.mxu0 0.0
    %1531 = vmatpush1.msra.mxu0 0.0
    %1532 = vmatprep.subr.mxu0 0.0
    %1533 = vmatpush1.msra.mxu0 0.0
    %1534 = vmatprep.subr.mxu0 0.0
    %1535 = vmatpush1.msra.mxu0 0.0
    %1536 = vmatprep.subr.mxu0 0.0
    %1537 = vmatpush1.msra.mxu0 0.0
    %1538 = vmatprep.subr.mxu0 0.0
    %1539 = vmatpush1.msra.mxu0 0.0
    %1540 = vmatprep.subr.mxu0 0.0
    %1541 = vmatpush1.msra.mxu0 0.0
    %1542 = vmatprep.subr.mxu0 0.0
    %1543 = vmatpush1.msra.mxu0 0.0
    %1544 = vmatprep.subr.mxu0 0.0
    %1545 = vmatpush1.msra.mxu0 0.0
    %1546 = vmatprep.subr.mxu0 0.0
    %1547 = vmatpush1.msra.mxu0 0.0
    %1548 = vmatprep.subr.mxu0 0.0
    %1549 = vmatpush1.msra.mxu0 0.0
    %1550 = vmatprep.subr.mxu0 0.0
    %1551 = vmatpush1.msra.mxu0 0.0
    %1552 = vmatprep.subr.mxu0 0.0
    %1553 = vmatpush1.msra.mxu0 0.0
    %1554 = vmatprep.subr.mxu0 0.0
    %1555 = vmatpush1.msra.mxu0 0.0
    %1556 = vmatprep.subr.mxu0 0.0
    %1557 = vmatpush1.msra.mxu0 0.0
    %1558 = vmatprep.subr.mxu0 0.0
    %1559 = vmatpush1.msra.mxu0 0.0
    %1560 = vmatprep.subr.mxu0 0.0
    %1561 = vmatpush1.msra.mxu0 0.0
    %1562 = vmatprep.mubr.f32.mxu0 0.0
    %1563 = vmatmul.mubr.f32.gmra.mrb[0].mxu0 %v1382
    %v1564 = vpop.f32.mrb[0].mxu0
    %v1565 = vadd.f32 0.0, %v1564
    %v1566 = vpop.f32.mrb[0].mxu0
    %1567 = vdwg.mxu0
    %v1568 = vadd.f32 %v169, %v1565
    %v1569 = vtanh.pop %v1568
    %1570 = vrot.lane.b32.xlu0 %v1479, 32
    %v1571 = vpop.permute.xlu0 %1570
    %v1572 = vadd.f32 %v1569, %v1571
    %v1573 = vld [vmem:[%s263] sm:$0xff]
    %v1574 = vld [vmem:[%s263 + $0x8] sm:$0xff]
    %v1575 = vld [vmem:[%s263 + $0x10] sm:$0xff]
    %v1576 = vld [vmem:[%s263 + $0x18] sm:$0xff]
    %v1577 = vld [vmem:[%s263 + $0x20] sm:$0xff]
    %v1578 = vld [vmem:[%s263 + $0x28] sm:$0xff]
    %v1579 = vld [vmem:[%s263 + $0x30] sm:$0xff]
    %v1580 = vld [vmem:[%s263 + $0x38] sm:$0xff]
    %v1581 = vld [vmem:[%s263 + $0x40] sm:$0xff]
    %v1582 = vld [vmem:[%s263 + $0x48] sm:$0xff]
    %v1583 = vld [vmem:[%s263 + $0x50] sm:$0xff]
    %v1584 = vld [vmem:[%s263 + $0x58] sm:$0xff]
    %v1585 = vld [vmem:[%s263 + $0x60] sm:$0xff]
    %v1586 = vld [vmem:[%s263 + $0x68] sm:$0xff]
    %v1587 = vld [vmem:[%s263 + $0x70] sm:$0xff]
    %v1588 = vld [vmem:[%s263 + $0x78] sm:$0xff]
    %v1589 = vld [vmem:[%s280] sm:$0x1]
    %v1591 = vlaneseq
    %v1592 = vshrl.u32 %v1591, 7
    %v1593 = vsub.s32 0, %v1592
    %v1594 = vrot.slane %v1589, %v1593
    %1596 = vmatprep.subr.mxu0 0.0
    %1597 = vmatpush1.msra.mxu0 %v1573
    %1598 = vmatprep.subr.mxu0 0.0
    %1599 = vmatpush1.msra.mxu0 %v1574
    %1600 = vmatprep.subr.mxu0 0.0
    %1601 = vmatpush1.msra.mxu0 %v1575
    %1602 = vmatprep.subr.mxu0 0.0
    %1603 = vmatpush1.msra.mxu0 %v1576
    %1604 = vmatprep.subr.mxu0 0.0
    %1605 = vmatpush1.msra.mxu0 %v1577
    %1606 = vmatprep.subr.mxu0 0.0
    %1607 = vmatpush1.msra.mxu0 %v1578
    %1608 = vmatprep.subr.mxu0 0.0
    %1609 = vmatpush1.msra.mxu0 %v1579
    %1610 = vmatprep.subr.mxu0 0.0
    %1611 = vmatpush1.msra.mxu0 %v1580
    %1612 = vmatprep.subr.mxu0 0.0
    %1613 = vmatpush1.msra.mxu0 %v1581
    %1614 = vmatprep.subr.mxu0 0.0
    %1615 = vmatpush1.msra.mxu0 %v1582
    %1616 = vmatprep.subr.mxu0 0.0
    %1617 = vmatpush1.msra.mxu0 %v1583
    %1618 = vmatprep.subr.mxu0 0.0
    %1619 = vmatpush1.msra.mxu0 %v1584
    %1620 = vmatprep.subr.mxu0 0.0
    %1621 = vmatpush1.msra.mxu0 %v1585
    %1622 = vmatprep.subr.mxu0 0.0
    %1623 = vmatpush1.msra.mxu0 %v1586
    %1624 = vmatprep.subr.mxu0 0.0
    %1625 = vmatpush1.msra.mxu0 %v1587
    %1626 = vmatprep.subr.mxu0 0.0
    %1627 = vmatpush1.msra.mxu0 %v1588
    %1628 = vmatprep.subr.mxu0 0.0
    %1629 = vmatpush1.msra.mxu0 0.0
    %1630 = vmatprep.subr.mxu0 0.0
    %1631 = vmatpush1.msra.mxu0 0.0
    %1632 = vmatprep.subr.mxu0 0.0
    %1633 = vmatpush1.msra.mxu0 0.0
    %1634 = vmatprep.subr.mxu0 0.0
    %1635 = vmatpush1.msra.mxu0 0.0
    %1636 = vmatprep.subr.mxu0 0.0
    %1637 = vmatpush1.msra.mxu0 0.0
    %1638 = vmatprep.subr.mxu0 0.0
    %1639 = vmatpush1.msra.mxu0 0.0
    %1640 = vmatprep.subr.mxu0 0.0
    %1641 = vmatpush1.msra.mxu0 0.0
    %1642 = vmatprep.subr.mxu0 0.0
    %1643 = vmatpush1.msra.mxu0 0.0
    %1644 = vmatprep.subr.mxu0 0.0
    %1645 = vmatpush1.msra.mxu0 0.0
    %1646 = vmatprep.subr.mxu0 0.0
    %1647 = vmatpush1.msra.mxu0 0.0
    %1648 = vmatprep.subr.mxu0 0.0
    %1649 = vmatpush1.msra.mxu0 0.0
    %1650 = vmatprep.subr.mxu0 0.0
    %1651 = vmatpush1.msra.mxu0 0.0
    %1652 = vmatprep.subr.mxu0 0.0
    %1653 = vmatpush1.msra.mxu0 0.0
    %1654 = vmatprep.subr.mxu0 0.0
    %1655 = vmatpush1.msra.mxu0 0.0
    %1656 = vmatprep.subr.mxu0 0.0
    %1657 = vmatpush1.msra.mxu0 0.0
    %1658 = vmatprep.subr.mxu0 0.0
    %1659 = vmatpush1.msra.mxu0 0.0
    %1660 = vmatprep.mubr.f32.mxu0 0.0
    %1661 = vmatmul.mubr.f32.gmra.mrb[0].mxu0 %v1572
    %v1662 = vpop.f32.mrb[0].mxu0
    %v1663 = vadd.f32 %v1594, %v1662
    %v1664 = vpop.f32.mrb[0].mxu0
    %1665 = vdwg.mxu0
    %v1666 = vtanh.pop %v1663
    %s1667 = scalar_lea.vmem %s5, 56
    %1668 = vst [vmem:[%s1667] sm:$0xff] %v1666
    %1669 = vst [vmem:[%s6] sm:$0xff] %v1569
    %s1670 = scalar_lea.vmem %s6, 8
    %1671 = vst [vmem:[%s1670] sm:$0xff] %v1666
    // Predicated region
    $region26: #{encoder_forward.1} parent=1 // pred_check
      _
    $region27: #{encoder_forward.1} parent=1 // pred_check_branch
      %1673 = sbr.rel (0) target = $region29
    $region28: #{encoder_forward.1} parent=1 // pred_region
      _
    $region29: #{encoder_forward.1} parent=1 // pred_fallthru
      _
    // Predicated region
    $region30: #{encoder_forward.1} parent=1 // pred_check
      _
    $region31: #{encoder_forward.1} parent=1 // pred_check_branch
      %1675 = sbr.rel (0) target = $region33
    $region32: #{encoder_forward.1} parent=1 // pred_region
      _
    $region33: #{encoder_forward.1} parent=1 // pred_fallthru
      _
    // Predicated region
    $region34: #{encoder_forward.1} parent=1 // pred_check
      _
    $region35: #{encoder_forward.1} parent=1 // pred_check_branch
      %1677 = sbr.rel (0) target = $region37
    $region36: #{encoder_forward.1} parent=1 // pred_region
      _
    $region37: #{encoder_forward.1} parent=1 // pred_fallthru
      _
    // Predicated region
    $region38: #{encoder_forward.1} parent=1 // pred_check
      _
    $region39: #{encoder_forward.1} parent=1 // pred_check_branch
      %1679 = sbr.rel (0) target = $region41
    $region40: #{encoder_forward.1} parent=1 // pred_region
      _
    $region41: #{encoder_forward.1} parent=1 // pred_fallthru
      _
    %1680 = vsyncpa [#allocation3], 1

</llo_original>
